<compile_context>
chip_gen: v7x
topology: tpu7x:2x2x1
jax: 0.10.0
libtpu: 0.0.40
codegen_flags: <defaults>
</compile_context>

<pallas_src>
import functools

import jax
import jax.numpy as jnp
from jax import lax
from jax.experimental import pallas as pl
from jax.experimental.pallas import tpu as pltpu


def _round_up(v, m):
    return ((v + m - 1) // m) * m


def egsnp_kernel(
    x_ref,      # (t_seq, bs_blk, in_p)  streamed x chunk, time-major
    wx_ref,     # (in_p, 3*H_p)          [W_ir.T | W_ic.T | W_ia.T]
    bx_ref,     # (1, 3*H_p)             fused gate biases
    whu_ref,    # (2*H_p, 3*H_p)         [[W_hr.T|W_hc.T|0],[W_ur|W_uc|W_ua.T]]
    wlin_ref,   # (H_p, out_p)           W_lin.T
    blin_ref,   # (1, out_p)
    out_ref,    # (bs_blk, out_p)
    hu_ref,     # VMEM scratch (bs_blk, 2*H_p)  recurrent state [h | u]
    xproj_ref,  # VMEM scratch (t_seq*bs_blk, 3*H_p)
    *,
    t_seq,
    bs_blk,
    hidden_p,
    seq_len,
    ragged,
):
    s = pl.program_id(1)          # sequence-chunk axis ("arbitrary")
    H = hidden_p
    cdt = wx_ref.dtype            # MXU operand dtype (f32 or bf16)

    @pl.when(s == 0)
    def _init():
        hu_ref[...] = jnp.zeros_like(hu_ref)

    # Hoisted input projection for the whole chunk: one big MXU matmul, with
    # all gate biases folded in once (outside the recurrent loop).
    x2d = x_ref[...].reshape(t_seq * bs_blk, -1).astype(cdt)
    xproj_ref[...] = (
        jnp.dot(x2d, wx_ref[...], preferred_element_type=jnp.float32)
        + bx_ref[...].astype(jnp.float32)
    )

    w_hu = whu_ref[...]
    # TODO(synk): weight-stationary MXU driving for w_hu (push RHS once per
    # chunk, only acc_lhs/pop inside the loop; MRB accumulate on v7x).

    def make_step(masked, n_valid):
        def step(t, hu):
            row = pl.multiple_of(t * bs_blk, bs_blk)
            gx = xproj_ref[pl.ds(row, bs_blk), :]                # (bs_blk, 3H)
            # ONE fused MXU op per timestep.
            pre = gx + jnp.dot(hu.astype(cdt), w_hu,
                               preferred_element_type=jnp.float32)
            rc = jax.nn.sigmoid(pre[:, : 2 * H])
            a = jnp.tanh(pre[:, 2 * H:])
            u = hu[:, H:]
            u_new = rc[:, :H] * u - rc[:, H:] * a
            hu_new = jnp.concatenate([a, u_new], axis=1)         # h_new = a
            if masked:
                m = (t < n_valid).astype(jnp.float32)
                hu_new = hu + m * (hu_new - hu)
            return hu_new
        return step

    unroll = t_seq if t_seq <= 16 else 8

    def run(masked):
        n_valid = seq_len - s * t_seq
        hu_ref[...] = lax.fori_loop(
            0, t_seq, make_step(masked, n_valid), hu_ref[...], unroll=unroll)

    last = pl.num_programs(1) - 1
    if ragged:
        # Only the last chunk pays the ragged-tail mask.
        @pl.when(s < last)
        def _full():
            run(False)

        @pl.when(s == last)
        def _tail():
            run(True)
    else:
        run(False)

    @pl.when(s == last)
    def _finalize():
        h_fin = hu_ref[:, :H]
        out_ref[...] = (
            jnp.dot(h_fin.astype(cdt), wlin_ref[...],
                    preferred_element_type=jnp.float32)
            + blin_ref[...].astype(jnp.float32)
        )


def init_params(key, input_size, hidden_size, output_size):
    ks = jax.random.split(key, 16)

    def xavier(k, shape):
        fan_out, fan_in = shape
        lim = (6.0 / (fan_in + fan_out)) ** 0.5
        return jax.random.uniform(k, shape, jnp.float32, -lim, lim)

    return {
        "W_ir": xavier(ks[0], (hidden_size, input_size)),
        "W_hr": xavier(ks[1], (hidden_size, hidden_size)),
        "W_ur": xavier(ks[2], (hidden_size, hidden_size)),
        "W_ic": xavier(ks[3], (hidden_size, input_size)),
        "W_hc": xavier(ks[4], (hidden_size, hidden_size)),
        "W_uc": xavier(ks[5], (hidden_size, hidden_size)),
        "W_ia": xavier(ks[6], (hidden_size, input_size)),
        "W_ua": xavier(ks[7], (hidden_size, hidden_size)),
        # Cell biases are zero-initialized in the PyTorch module.
        "b_ir": jnp.zeros((hidden_size,), jnp.float32),
        "b_hr": jnp.zeros((hidden_size,), jnp.float32),
        "b_ur": jnp.zeros((hidden_size,), jnp.float32),
        "b_ic": jnp.zeros((hidden_size,), jnp.float32),
        "b_hc": jnp.zeros((hidden_size,), jnp.float32),
        "b_uc": jnp.zeros((hidden_size,), jnp.float32),
        "b_ia": jnp.zeros((hidden_size,), jnp.float32),
        "b_ua": jnp.zeros((hidden_size,), jnp.float32),
        # Final Linear layer.
        "W_lin": xavier(ks[8], (output_size, hidden_size)),
        "b_lin": jax.random.uniform(ks[9], (output_size,), jnp.float32, -0.1, 0.1),
    }


def prepare_params(params, param_dtype=jnp.float32):
    """One-time fusion / transposition / lane-dense padding of parameters.

    param_dtype=jnp.bfloat16 halves resident weight VMEM and roughly doubles
    MXU throughput (accumulation stays f32); verify tolerance (~1e-3) before
    enabling.  Default f32 keeps exact forward semantics.
    """
    H, I = params["W_ir"].shape
    O = params["W_lin"].shape[0]
    H_p = _round_up(H, 128)
    # Lane-dense x rows once the input is big enough to amortize the zeros.
    I_p = _round_up(I, 8) if I <= 64 else _round_up(I, 128)
    O_p = _round_up(O, 128)

    def pad2(m, rows, cols):
        return jnp.pad(m, ((0, rows - m.shape[0]), (0, cols - m.shape[1])))

    def pad1(v, n):
        return jnp.pad(v, (0, n - v.shape[0]))

    w_x = jnp.concatenate(
        [pad2(params["W_ir"].T, I_p, H_p),
         pad2(params["W_ic"].T, I_p, H_p),
         pad2(params["W_ia"].T, I_p, H_p)], axis=1)                 # (I_p, 3H_p)
    b_x = jnp.concatenate(
        [pad1(params["b_ir"] + params["b_hr"] + params["b_ur"], H_p),
         pad1(params["b_ic"] + params["b_hc"] + params["b_uc"], H_p),
         pad1(params["b_ia"] + params["b_ua"], H_p)]).reshape(1, 3 * H_p)

    # Fused recurrent RHS: a single (2H_p, 3H_p) block so each timestep is
    # ONE [h | u] @ w_hu MXU op.
    # NOTE: W_ur / W_uc are used NON-transposed in PyTorch (u @ W_ur), while
    # W_hr / W_hc / W_ua enter transposed; 'a' has no h term (zero block).
    zeros_hh = jnp.zeros((H_p, H_p), jnp.float32)
    w_hu_top = jnp.concatenate(
        [pad2(params["W_hr"].T, H_p, H_p),
         pad2(params["W_hc"].T, H_p, H_p),
         zeros_hh], axis=1)
    w_hu_bot = jnp.concatenate(
        [pad2(params["W_ur"], H_p, H_p),
         pad2(params["W_uc"], H_p, H_p),
         pad2(params["W_ua"].T, H_p, H_p)], axis=1)
    w_hu = jnp.concatenate([w_hu_top, w_hu_bot], axis=0)            # (2H_p, 3H_p)

    w_lin = pad2(params["W_lin"].T, H_p, O_p)
    b_lin = pad1(params["b_lin"], O_p).reshape(1, O_p)

    return {
        "w_x": w_x.astype(param_dtype),
        "b_x": b_x.astype(jnp.float32),
        "w_hu": w_hu.astype(param_dtype),
        "w_lin": w_lin.astype(param_dtype),
        "b_lin": b_lin.astype(jnp.float32),
    }


def _vmem_budget_bytes():
    """Generation-aware VMEM budget (leave headroom for compiler scratch)."""
    try:
        cap = int(pltpu.get_tpu_info().vmem_capacity_bytes)
    except Exception:
        cap = 64 * 2 ** 20
    return (cap * 3) // 4


@functools.partial(jax.jit, static_argnames=("out_size", "t_seq"))
def egsnp_forward(x, prepped, *, out_size, t_seq=None):
    bs, seq, in_size = x.shape
    in_p = prepped["w_x"].shape[0]
    H_p = prepped["w_hu"].shape[1] // 3
    out_p = prepped["w_lin"].shape[1]
    f32b = 4

    bs_p = _round_up(max(bs, 1), 8)
    # Batch-block "parallel" grid axis so the v7x megacore can shard the
    # independent per-row recurrences across its 2 TensorCores.  Degenerates
    # to one block for small batch (and is harmless on v5e/v6e).
    nbb = 2 if (bs_p >= 16 and bs_p % 16 == 0) else 1
    bs_blk = bs_p // nbb

    if t_seq is None:
        # Fill the 256-row MXU (v6e/v7x) with the hoisted x-projection matmul.
        t_seq = max(1, 256 // bs_blk)
    t_seq = max(1, min(int(t_seq), seq))

    weight_bytes = sum(
        int(v.size) * jnp.dtype(v.dtype).itemsize for v in prepped.values())

    def vmem_needed(ts):
        return (weight_bytes
                + 2 * ts * bs_blk * in_p * f32b        # double-buffered x chunk
                + 2 * bs_blk * out_p * f32b            # output block
                + bs_blk * 2 * H_p * f32b              # hu state scratch
                + ts * bs_blk * 3 * H_p * f32b)        # xproj slab

    budget = _vmem_budget_bytes()
    while t_seq > 1 and vmem_needed(t_seq) > budget:
        t_seq //= 2

    seq_p = _round_up(seq, t_seq)
    num_chunks = seq_p // t_seq
    ragged = (seq % t_seq) != 0

    # Layout plumbing: time-major + zero-pad (seq, batch, feature) so every
    # timestep of a chunk is a sublane-aligned (bs_blk, in_p) row block.
    x_tm = jnp.transpose(x, (1, 0, 2)).astype(jnp.float32)
    x_tm = jnp.pad(
        x_tm, ((0, seq_p - seq), (0, bs_p - bs), (0, in_p - in_size)))

    kernel = functools.partial(
        egsnp_kernel, t_seq=t_seq, bs_blk=bs_blk, hidden_p=H_p,
        seq_len=seq, ragged=ragged)

    def _resident(arr):  # whole array stays in VMEM across all grid steps
        return pl.BlockSpec(arr.shape, lambda j, s: (0,) * arr.ndim)

    in_specs = [
        pl.BlockSpec((t_seq, bs_blk, in_p), lambda j, s: (s, j, 0)),  # x chunk
        _resident(prepped["w_x"]),
        _resident(prepped["b_x"]),
        _resident(prepped["w_hu"]),
        _resident(prepped["w_lin"]),
        _resident(prepped["b_lin"]),
    ]
    out_spec = pl.BlockSpec((bs_blk, out_p), lambda j, s: (j, 0))

    scratch = [
        pltpu.VMEM((bs_blk, 2 * H_p), jnp.float32),              # [h | u] state
        pltpu.VMEM((t_seq * bs_blk, 3 * H_p), jnp.float32),      # xproj slab
    ]

    cp_kwargs = dict(dimension_semantics=("parallel", "arbitrary"))
    needed = vmem_needed(t_seq)
    if needed > 12 * 2 ** 20:
        cp_kwargs["vmem_limit_bytes"] = int(
            min(needed + (8 << 20), max(budget, needed)))

    cost = pl.CostEstimate(
        flops=int(2 * seq_p * bs_p * (in_p * 3 * H_p + 2 * H_p * 3 * H_p)
                  + 2 * bs_p * H_p * out_p),
        transcendentals=int(3 * seq_p * bs_p * H_p),
        bytes_accessed=int(seq_p * bs_p * in_p * f32b + weight_bytes
                           + bs_p * out_p * f32b),
    )

    out_padded = pl.pallas_call(
        kernel,
        out_shape=jax.ShapeDtypeStruct((bs_p, out_p), jnp.float32),
        grid=(nbb, num_chunks),
        in_specs=in_specs,
        out_specs=out_spec,
        scratch_shapes=scratch,
        compiler_params=pltpu.CompilerParams(**cp_kwargs),
        cost_estimate=cost,
    )(x_tm, prepped["w_x"], prepped["b_x"], prepped["w_hu"],
      prepped["w_lin"], prepped["b_lin"])

    return out_padded[:bs, :out_size]


def egsnp_reference(x, params):
    """Pure-JAX reference mirroring the PyTorch forward exactly."""
    bs, seq, _ = x.shape
    hidden = params["W_ir"].shape[0]
    h = jnp.zeros((hidden,), jnp.float32)
    u = jnp.zeros((hidden,), jnp.float32)
    for t in range(seq):
        xt = x[:, t, :]
        r = jax.nn.sigmoid(xt @ params["W_ir"].T + params["b_ir"]
                           + h @ params["W_hr"].T + params["b_hr"]
                           + u @ params["W_ur"] + params["b_ur"])
        c = jax.nn.sigmoid(xt @ params["W_ic"].T + params["b_ic"]
                           + h @ params["W_hc"].T + params["b_hc"]
                           + u @ params["W_uc"] + params["b_uc"])
        a = jnp.tanh(xt @ params["W_ia"].T + params["b_ia"]
                     + u @ params["W_ua"].T + params["b_ua"])
        u = r * u - c * a
        h = a
    return h @ params["W_lin"].T + params["b_lin"]


if __name__ == "__main__":
    key = jax.random.PRNGKey(0)
    k_x, k_p, k_x2, k_x3 = jax.random.split(key, 4)

    input_size, hidden_size, output_size = 16, 32, 8
    params = init_params(k_p, input_size, hidden_size, output_size)
    prepped = prepare_params(params)   # f32: exact PyTorch forward semantics

    # Config 1: single chunk, batch padded 2 -> 8.
    bs, seq = 2, 8
    x = jax.random.normal(k_x, (bs, seq, input_size), jnp.float32)
    out = jax.block_until_ready(
        egsnp_forward(x, prepped, out_size=output_size))
    ref = egsnp_reference(x, params)
    assert out.shape == (bs, output_size)
    assert jnp.allclose(out, ref, rtol=1e-4, atol=1e-4), (out, ref)

    # Config 2: multi-chunk streaming with a ragged tail (seq % t_seq != 0),
    # exercising the masked last-chunk path.
    bs2, seq2 = 3, 11
    x2 = jax.random.normal(k_x2, (bs2, seq2, input_size), jnp.float32)
    out2 = jax.block_until_ready(
        egsnp_forward(x2, prepped, out_size=output_size, t_seq=4))
    ref2 = egsnp_reference(x2, params)
    assert out2.shape == (bs2, output_size)
    assert jnp.allclose(out2, ref2, rtol=1e-4, atol=1e-4), (out2, ref2)

    # Config 3: batch large enough to exercise the "parallel" batch-block axis.
    bs3, seq3 = 16, 5
    x3 = jax.random.normal(k_x3, (bs3, seq3, input_size), jnp.float32)
    out3 = jax.block_until_ready(
        egsnp_forward(x3, prepped, out_size=output_size))
    ref3 = egsnp_reference(x3, params)
    assert out3.shape == (bs3, output_size)
    assert jnp.allclose(out3, ref3, rtol=1e-4, atol=1e-4), (out3, ref3)

    print("KERNEL_OK")
</pallas_src>

<mosaic_0001>
module attributes {stable_mosaic.version = 11 : i64} {
  func.func @egsnp_kernel(%arg0: i32, %arg1: i32, %arg2: memref<8x8x16xf32, #tpu.memory_space<vmem>>, %arg3: memref<16x384xf32, #tpu.memory_space<vmem>>, %arg4: memref<1x384xf32, #tpu.memory_space<vmem>>, %arg5: memref<256x384xf32, #tpu.memory_space<vmem>>, %arg6: memref<128x128xf32, #tpu.memory_space<vmem>>, %arg7: memref<1x128xf32, #tpu.memory_space<vmem>>, %arg8: memref<8x128xf32, #tpu.memory_space<vmem>>, %arg9: memref<8x256xf32, #tpu.memory_space<vmem>>, %arg10: memref<64x384xf32, #tpu.memory_space<vmem>>) attributes {dimension_semantics = [#tpu.dimension_semantics<parallel>, #tpu.dimension_semantics<arbitrary>], iteration_bounds = array<i64: 1, 1>, scalar_prefetch = 0 : i64, scratch_operands = 2 : i64, tpu.core_type = #tpu.core_type<tc>, window_params = [{transform_indices = @transform_0, window_bounds = array<i64: 8, 8, 16>}, {pipeline_mode = #tpu.pipeline_mode<synchronous>, transform_indices = @transform_1, window_bounds = array<i64: 16, 384>}, {pipeline_mode = #tpu.pipeline_mode<synchronous>, transform_indices = @transform_2, window_bounds = array<i64: 1, 384>}, {pipeline_mode = #tpu.pipeline_mode<synchronous>, transform_indices = @transform_3, window_bounds = array<i64: 256, 384>}, {pipeline_mode = #tpu.pipeline_mode<synchronous>, transform_indices = @transform_4, window_bounds = array<i64: 128, 128>}, {pipeline_mode = #tpu.pipeline_mode<synchronous>, transform_indices = @transform_5, window_bounds = array<i64: 1, 128>}, {transform_indices = @transform_6, window_bounds = array<i64: 8, 128>}]} {
    %c0_i32 = arith.constant 0 : i32
    %0 = arith.cmpi eq, %arg1, %c0_i32 : i32
    %1 = arith.extui %0 : i1 to i32
    %c0_i32_0 = arith.constant 0 : i32
    %2 = arith.cmpi ne, %1, %c0_i32_0 : i32
    scf.if %2 {
      %cst_50 = arith.constant 0.000000e+00 : f32
      %185 = vector.broadcast %cst_50 : f32 to vector<8x256xf32>
      %c0_51 = arith.constant 0 : index
      %c0_52 = arith.constant 0 : index
      %186 = vector.load %arg9[%c0_51, %c0_52] : memref<8x256xf32, #tpu.memory_space<vmem>>, vector<8x256xf32>
      tpu.vector_store %arg9[%c0_51, %c0_52], %185 {strides = array<i32>} : memref<8x256xf32, #tpu.memory_space<vmem>>, vector<8x256xf32>,
    } else {
    }
    %c0 = arith.constant 0 : index
    %c0_1 = arith.constant 0 : index
    %c0_2 = arith.constant 0 : index
    %3 = vector.load %arg2[%c0, %c0_1, %c0_2] : memref<8x8x16xf32, #tpu.memory_space<vmem>>, vector<8x8x16xf32>
    %4 = vector.shape_cast %3 : vector<8x8x16xf32> to vector<64x16xf32>
    %c0_3 = arith.constant 0 : index
    %c0_4 = arith.constant 0 : index
    %5 = vector.load %arg3[%c0_3, %c0_4] : memref<16x384xf32, #tpu.memory_space<vmem>>, vector<16x384xf32>
    %cst = arith.constant dense<0.000000e+00> : vector<64x384xf32>
    %6 = tpu.matmul %4, %5, %cst {dimension_numbers = #tpu.dot_dimension_numbers<[1], [0], [0], [1], [0, 0, 1, 1], [], []>} : vector<64x16xf32>, vector<16x384xf32>, vector<64x384xf32> -> vector<64x384xf32>
    %c0_5 = arith.constant 0 : index
    %c0_6 = arith.constant 0 : index
    %7 = vector.load %arg4[%c0_5, %c0_6] : memref<1x384xf32, #tpu.memory_space<vmem>>, vector<1x384xf32>
    %8 = vector.broadcast %7 : vector<1x384xf32> to vector<64x384xf32>
    %9 = arith.addf %6, %8 : vector<64x384xf32>
    %c0_7 = arith.constant 0 : index
    %c0_8 = arith.constant 0 : index
    %10 = vector.load %arg10[%c0_7, %c0_8] : memref<64x384xf32, #tpu.memory_space<vmem>>, vector<64x384xf32>
    tpu.vector_store %arg10[%c0_7, %c0_8], %9 {strides = array<i32>} : memref<64x384xf32, #tpu.memory_space<vmem>>, vector<64x384xf32>,
    %c0_9 = arith.constant 0 : index
    %c0_10 = arith.constant 0 : index
    %11 = vector.load %arg5[%c0_9, %c0_10] : memref<256x384xf32, #tpu.memory_space<vmem>>, vector<256x384xf32>
    %c0_11 = arith.constant 0 : index
    %c0_12 = arith.constant 0 : index
    %12 = vector.load %arg9[%c0_11, %c0_12] : memref<8x256xf32, #tpu.memory_space<vmem>>, vector<8x256xf32>
    %c0_i32_13 = arith.constant 0 : i32
    %c8_i32 = arith.constant 8 : i32
    %13 = arith.muli %c0_i32_13, %c8_i32 : i32
    %14 = tpu.assume_multiple %13, 8 : i32
    %15 = arith.index_cast %14 : i32 to index
    %c0_14 = arith.constant 0 : index
    %16 = vector.load %arg10[%15, %c0_14] : memref<64x384xf32, #tpu.memory_space<vmem>>, vector<8x384xf32>
    %cst_15 = arith.constant dense<0.000000e+00> : vector<8x384xf32>
    %17 = tpu.matmul %12, %11, %cst_15 {dimension_numbers = #tpu.dot_dimension_numbers<[1], [0], [0], [1], [0, 0, 1, 1], [], []>} : vector<8x256xf32>, vector<256x384xf32>, vector<8x384xf32> -> vector<8x384xf32>
    %18 = arith.addf %16, %17 : vector<8x384xf32>
    %19 = vector.extract_strided_slice %18 {offsets = [0, 0], sizes = [8, 256], strides = [1, 1]} : vector<8x384xf32> to vector<8x256xf32>
    %20 = arith.negf %19 : vector<8x256xf32>
    %21 = math.exp %20 : vector<8x256xf32>
    %cst_16 = arith.constant 1.000000e+00 : f32
    %22 = vector.broadcast %cst_16 : f32 to vector<8x256xf32>
    %23 = arith.addf %22, %21 : vector<8x256xf32>
    %24 = arith.divf %22, %23 : vector<8x256xf32>
    %25 = vector.extract_strided_slice %18 {offsets = [0, 256], sizes = [8, 128], strides = [1, 1]} : vector<8x384xf32> to vector<8x128xf32>
    %26 = math.tanh %25 : vector<8x128xf32>
    %27 = vector.extract_strided_slice %12 {offsets = [0, 128], sizes = [8, 128], strides = [1, 1]} : vector<8x256xf32> to vector<8x128xf32>
    %28 = vector.extract_strided_slice %24 {offsets = [0, 0], sizes = [8, 128], strides = [1, 1]} : vector<8x256xf32> to vector<8x128xf32>
    %29 = arith.mulf %28, %27 : vector<8x128xf32>
    %30 = vector.extract_strided_slice %24 {offsets = [0, 128], sizes = [8, 128], strides = [1, 1]} : vector<8x256xf32> to vector<8x128xf32>
    %31 = arith.mulf %30, %26 : vector<8x128xf32>
    %32 = arith.subf %29, %31 : vector<8x128xf32>
    %33 = tpu.concatenate %26, %32 in 1 : vector<8x128xf32>, vector<8x128xf32> -> vector<8x256xf32>
    %c1_i32 = arith.constant 1 : i32
    %c8_i32_17 = arith.constant 8 : i32
    %34 = arith.muli %c1_i32, %c8_i32_17 : i32
    %35 = tpu.assume_multiple %34, 8 : i32
    %36 = arith.index_cast %35 : i32 to index
    %c0_18 = arith.constant 0 : index
    %37 = vector.load %arg10[%36, %c0_18] : memref<64x384xf32, #tpu.memory_space<vmem>>, vector<8x384xf32>
    %cst_19 = arith.constant dense<0.000000e+00> : vector<8x384xf32>
    %38 = tpu.matmul %33, %11, %cst_19 {dimension_numbers = #tpu.dot_dimension_numbers<[1], [0], [0], [1], [0, 0, 1, 1], [], []>} : vector<8x256xf32>, vector<256x384xf32>, vector<8x384xf32> -> vector<8x384xf32>
    %39 = arith.addf %37, %38 : vector<8x384xf32>
    %40 = vector.extract_strided_slice %39 {offsets = [0, 0], sizes = [8, 256], strides = [1, 1]} : vector<8x384xf32> to vector<8x256xf32>
    %41 = arith.negf %40 : vector<8x256xf32>
    %42 = math.exp %41 : vector<8x256xf32>
    %cst_20 = arith.constant 1.000000e+00 : f32
    %43 = vector.broadcast %cst_20 : f32 to vector<8x256xf32>
    %44 = arith.addf %43, %42 : vector<8x256xf32>
    %45 = arith.divf %43, %44 : vector<8x256xf32>
    %46 = vector.extract_strided_slice %39 {offsets = [0, 256], sizes = [8, 128], strides = [1, 1]} : vector<8x384xf32> to vector<8x128xf32>
    %47 = math.tanh %46 : vector<8x128xf32>
    %48 = vector.extract_strided_slice %33 {offsets = [0, 128], sizes = [8, 128], strides = [1, 1]} : vector<8x256xf32> to vector<8x128xf32>
    %49 = vector.extract_strided_slice %45 {offsets = [0, 0], sizes = [8, 128], strides = [1, 1]} : vector<8x256xf32> to vector<8x128xf32>
    %50 = arith.mulf %49, %48 : vector<8x128xf32>
    %51 = vector.extract_strided_slice %45 {offsets = [0, 128], sizes = [8, 128], strides = [1, 1]} : vector<8x256xf32> to vector<8x128xf32>
    %52 = arith.mulf %51, %47 : vector<8x128xf32>
    %53 = arith.subf %50, %52 : vector<8x128xf32>
    %54 = tpu.concatenate %47, %53 in 1 : vector<8x128xf32>, vector<8x128xf32> -> vector<8x256xf32>
    %c2_i32 = arith.constant 2 : i32
    %c8_i32_21 = arith.constant 8 : i32
    %55 = arith.muli %c2_i32, %c8_i32_21 : i32
    %56 = tpu.assume_multiple %55, 8 : i32
    %57 = arith.index_cast %56 : i32 to index
    %c0_22 = arith.constant 0 : index
    %58 = vector.load %arg10[%57, %c0_22] : memref<64x384xf32, #tpu.memory_space<vmem>>, vector<8x384xf32>
    %cst_23 = arith.constant dense<0.000000e+00> : vector<8x384xf32>
    %59 = tpu.matmul %54, %11, %cst_23 {dimension_numbers = #tpu.dot_dimension_numbers<[1], [0], [0], [1], [0, 0, 1, 1], [], []>} : vector<8x256xf32>, vector<256x384xf32>, vector<8x384xf32> -> vector<8x384xf32>
    %60 = arith.addf %58, %59 : vector<8x384xf32>
    %61 = vector.extract_strided_slice %60 {offsets = [0, 0], sizes = [8, 256], strides = [1, 1]} : vector<8x384xf32> to vector<8x256xf32>
    %62 = arith.negf %61 : vector<8x256xf32>
    %63 = math.exp %62 : vector<8x256xf32>
    %cst_24 = arith.constant 1.000000e+00 : f32
    %64 = vector.broadcast %cst_24 : f32 to vector<8x256xf32>
    %65 = arith.addf %64, %63 : vector<8x256xf32>
    %66 = arith.divf %64, %65 : vector<8x256xf32>
    %67 = vector.extract_strided_slice %60 {offsets = [0, 256], sizes = [8, 128], strides = [1, 1]} : vector<8x384xf32> to vector<8x128xf32>
    %68 = math.tanh %67 : vector<8x128xf32>
    %69 = vector.extract_strided_slice %54 {offsets = [0, 128], sizes = [8, 128], strides = [1, 1]} : vector<8x256xf32> to vector<8x128xf32>
    %70 = vector.extract_strided_slice %66 {offsets = [0, 0], sizes = [8, 128], strides = [1, 1]} : vector<8x256xf32> to vector<8x128xf32>
    %71 = arith.mulf %70, %69 : vector<8x128xf32>
    %72 = vector.extract_strided_slice %66 {offsets = [0, 128], sizes = [8, 128], strides = [1, 1]} : vector<8x256xf32> to vector<8x128xf32>
    %73 = arith.mulf %72, %68 : vector<8x128xf32>
    %74 = arith.subf %71, %73 : vector<8x128xf32>
    %75 = tpu.concatenate %68, %74 in 1 : vector<8x128xf32>, vector<8x128xf32> -> vector<8x256xf32>
    %c3_i32 = arith.constant 3 : i32
    %c8_i32_25 = arith.constant 8 : i32
    %76 = arith.muli %c3_i32, %c8_i32_25 : i32
    %77 = tpu.assume_multiple %76, 8 : i32
    %78 = arith.index_cast %77 : i32 to index
    %c0_26 = arith.constant 0 : index
    %79 = vector.load %arg10[%78, %c0_26] : memref<64x384xf32, #tpu.memory_space<vmem>>, vector<8x384xf32>
    %cst_27 = arith.constant dense<0.000000e+00> : vector<8x384xf32>
    %80 = tpu.matmul %75, %11, %cst_27 {dimension_numbers = #tpu.dot_dimension_numbers<[1], [0], [0], [1], [0, 0, 1, 1], [], []>} : vector<8x256xf32>, vector<256x384xf32>, vector<8x384xf32> -> vector<8x384xf32>
    %81 = arith.addf %79, %80 : vector<8x384xf32>
    %82 = vector.extract_strided_slice %81 {offsets = [0, 0], sizes = [8, 256], strides = [1, 1]} : vector<8x384xf32> to vector<8x256xf32>
    %83 = arith.negf %82 : vector<8x256xf32>
    %84 = math.exp %83 : vector<8x256xf32>
    %cst_28 = arith.constant 1.000000e+00 : f32
    %85 = vector.broadcast %cst_28 : f32 to vector<8x256xf32>
    %86 = arith.addf %85, %84 : vector<8x256xf32>
    %87 = arith.divf %85, %86 : vector<8x256xf32>
    %88 = vector.extract_strided_slice %81 {offsets = [0, 256], sizes = [8, 128], strides = [1, 1]} : vector<8x384xf32> to vector<8x128xf32>
    %89 = math.tanh %88 : vector<8x128xf32>
    %90 = vector.extract_strided_slice %75 {offsets = [0, 128], sizes = [8, 128], strides = [1, 1]} : vector<8x256xf32> to vector<8x128xf32>
    %91 = vector.extract_strided_slice %87 {offsets = [0, 0], sizes = [8, 128], strides = [1, 1]} : vector<8x256xf32> to vector<8x128xf32>
    %92 = arith.mulf %91, %90 : vector<8x128xf32>
    %93 = vector.extract_strided_slice %87 {offsets = [0, 128], sizes = [8, 128], strides = [1, 1]} : vector<8x256xf32> to vector<8x128xf32>
    %94 = arith.mulf %93, %89 : vector<8x128xf32>
    %95 = arith.subf %92, %94 : vector<8x128xf32>
    %96 = tpu.concatenate %89, %95 in 1 : vector<8x128xf32>, vector<8x128xf32> -> vector<8x256xf32>
    %c4_i32 = arith.constant 4 : i32
    %c8_i32_29 = arith.constant 8 : i32
    %97 = arith.muli %c4_i32, %c8_i32_29 : i32
    %98 = tpu.assume_multiple %97, 8 : i32
    %99 = arith.index_cast %98 : i32 to index
    %c0_30 = arith.constant 0 : index
    %100 = vector.load %arg10[%99, %c0_30] : memref<64x384xf32, #tpu.memory_space<vmem>>, vector<8x384xf32>
    %cst_31 = arith.constant dense<0.000000e+00> : vector<8x384xf32>
    %101 = tpu.matmul %96, %11, %cst_31 {dimension_numbers = #tpu.dot_dimension_numbers<[1], [0], [0], [1], [0, 0, 1, 1], [], []>} : vector<8x256xf32>, vector<256x384xf32>, vector<8x384xf32> -> vector<8x384xf32>
    %102 = arith.addf %100, %101 : vector<8x384xf32>
    %103 = vector.extract_strided_slice %102 {offsets = [0, 0], sizes = [8, 256], strides = [1, 1]} : vector<8x384xf32> to vector<8x256xf32>
    %104 = arith.negf %103 : vector<8x256xf32>
    %105 = math.exp %104 : vector<8x256xf32>
    %cst_32 = arith.constant 1.000000e+00 : f32
    %106 = vector.broadcast %cst_32 : f32 to vector<8x256xf32>
    %107 = arith.addf %106, %105 : vector<8x256xf32>
    %108 = arith.divf %106, %107 : vector<8x256xf32>
    %109 = vector.extract_strided_slice %102 {offsets = [0, 256], sizes = [8, 128], strides = [1, 1]} : vector<8x384xf32> to vector<8x128xf32>
    %110 = math.tanh %109 : vector<8x128xf32>
    %111 = vector.extract_strided_slice %96 {offsets = [0, 128], sizes = [8, 128], strides = [1, 1]} : vector<8x256xf32> to vector<8x128xf32>
    %112 = vector.extract_strided_slice %108 {offsets = [0, 0], sizes = [8, 128], strides = [1, 1]} : vector<8x256xf32> to vector<8x128xf32>
    %113 = arith.mulf %112, %111 : vector<8x128xf32>
    %114 = vector.extract_strided_slice %108 {offsets = [0, 128], sizes = [8, 128], strides = [1, 1]} : vector<8x256xf32> to vector<8x128xf32>
    %115 = arith.mulf %114, %110 : vector<8x128xf32>
    %116 = arith.subf %113, %115 : vector<8x128xf32>
    %117 = tpu.concatenate %110, %116 in 1 : vector<8x128xf32>, vector<8x128xf32> -> vector<8x256xf32>
    %c5_i32 = arith.constant 5 : i32
    %c8_i32_33 = arith.constant 8 : i32
    %118 = arith.muli %c5_i32, %c8_i32_33 : i32
    %119 = tpu.assume_multiple %118, 8 : i32
    %120 = arith.index_cast %119 : i32 to index
    %c0_34 = arith.constant 0 : index
    %121 = vector.load %arg10[%120, %c0_34] : memref<64x384xf32, #tpu.memory_space<vmem>>, vector<8x384xf32>
    %cst_35 = arith.constant dense<0.000000e+00> : vector<8x384xf32>
    %122 = tpu.matmul %117, %11, %cst_35 {dimension_numbers = #tpu.dot_dimension_numbers<[1], [0], [0], [1], [0, 0, 1, 1], [], []>} : vector<8x256xf32>, vector<256x384xf32>, vector<8x384xf32> -> vector<8x384xf32>
    %123 = arith.addf %121, %122 : vector<8x384xf32>
    %124 = vector.extract_strided_slice %123 {offsets = [0, 0], sizes = [8, 256], strides = [1, 1]} : vector<8x384xf32> to vector<8x256xf32>
    %125 = arith.negf %124 : vector<8x256xf32>
    %126 = math.exp %125 : vector<8x256xf32>
    %cst_36 = arith.constant 1.000000e+00 : f32
    %127 = vector.broadcast %cst_36 : f32 to vector<8x256xf32>
    %128 = arith.addf %127, %126 : vector<8x256xf32>
    %129 = arith.divf %127, %128 : vector<8x256xf32>
    %130 = vector.extract_strided_slice %123 {offsets = [0, 256], sizes = [8, 128], strides = [1, 1]} : vector<8x384xf32> to vector<8x128xf32>
    %131 = math.tanh %130 : vector<8x128xf32>
    %132 = vector.extract_strided_slice %117 {offsets = [0, 128], sizes = [8, 128], strides = [1, 1]} : vector<8x256xf32> to vector<8x128xf32>
    %133 = vector.extract_strided_slice %129 {offsets = [0, 0], sizes = [8, 128], strides = [1, 1]} : vector<8x256xf32> to vector<8x128xf32>
    %134 = arith.mulf %133, %132 : vector<8x128xf32>
    %135 = vector.extract_strided_slice %129 {offsets = [0, 128], sizes = [8, 128], strides = [1, 1]} : vector<8x256xf32> to vector<8x128xf32>
    %136 = arith.mulf %135, %131 : vector<8x128xf32>
    %137 = arith.subf %134, %136 : vector<8x128xf32>
    %138 = tpu.concatenate %131, %137 in 1 : vector<8x128xf32>, vector<8x128xf32> -> vector<8x256xf32>
    %c6_i32 = arith.constant 6 : i32
    %c8_i32_37 = arith.constant 8 : i32
    %139 = arith.muli %c6_i32, %c8_i32_37 : i32
    %140 = tpu.assume_multiple %139, 8 : i32
    %141 = arith.index_cast %140 : i32 to index
    %c0_38 = arith.constant 0 : index
    %142 = vector.load %arg10[%141, %c0_38] : memref<64x384xf32, #tpu.memory_space<vmem>>, vector<8x384xf32>
    %cst_39 = arith.constant dense<0.000000e+00> : vector<8x384xf32>
    %143 = tpu.matmul %138, %11, %cst_39 {dimension_numbers = #tpu.dot_dimension_numbers<[1], [0], [0], [1], [0, 0, 1, 1], [], []>} : vector<8x256xf32>, vector<256x384xf32>, vector<8x384xf32> -> vector<8x384xf32>
    %144 = arith.addf %142, %143 : vector<8x384xf32>
    %145 = vector.extract_strided_slice %144 {offsets = [0, 0], sizes = [8, 256], strides = [1, 1]} : vector<8x384xf32> to vector<8x256xf32>
    %146 = arith.negf %145 : vector<8x256xf32>
    %147 = math.exp %146 : vector<8x256xf32>
    %cst_40 = arith.constant 1.000000e+00 : f32
    %148 = vector.broadcast %cst_40 : f32 to vector<8x256xf32>
    %149 = arith.addf %148, %147 : vector<8x256xf32>
    %150 = arith.divf %148, %149 : vector<8x256xf32>
    %151 = vector.extract_strided_slice %144 {offsets = [0, 256], sizes = [8, 128], strides = [1, 1]} : vector<8x384xf32> to vector<8x128xf32>
    %152 = math.tanh %151 : vector<8x128xf32>
    %153 = vector.extract_strided_slice %138 {offsets = [0, 128], sizes = [8, 128], strides = [1, 1]} : vector<8x256xf32> to vector<8x128xf32>
    %154 = vector.extract_strided_slice %150 {offsets = [0, 0], sizes = [8, 128], strides = [1, 1]} : vector<8x256xf32> to vector<8x128xf32>
    %155 = arith.mulf %154, %153 : vector<8x128xf32>
    %156 = vector.extract_strided_slice %150 {offsets = [0, 128], sizes = [8, 128], strides = [1, 1]} : vector<8x256xf32> to vector<8x128xf32>
    %157 = arith.mulf %156, %152 : vector<8x128xf32>
    %158 = arith.subf %155, %157 : vector<8x128xf32>
    %159 = tpu.concatenate %152, %158 in 1 : vector<8x128xf32>, vector<8x128xf32> -> vector<8x256xf32>
    %c7_i32 = arith.constant 7 : i32
    %c8_i32_41 = arith.constant 8 : i32
    %160 = arith.muli %c7_i32, %c8_i32_41 : i32
    %161 = tpu.assume_multiple %160, 8 : i32
    %162 = arith.index_cast %161 : i32 to index
    %c0_42 = arith.constant 0 : index
    %163 = vector.load %arg10[%162, %c0_42] : memref<64x384xf32, #tpu.memory_space<vmem>>, vector<8x384xf32>
    %cst_43 = arith.constant dense<0.000000e+00> : vector<8x384xf32>
    %164 = tpu.matmul %159, %11, %cst_43 {dimension_numbers = #tpu.dot_dimension_numbers<[1], [0], [0], [1], [0, 0, 1, 1], [], []>} : vector<8x256xf32>, vector<256x384xf32>, vector<8x384xf32> -> vector<8x384xf32>
    %165 = arith.addf %163, %164 : vector<8x384xf32>
    %166 = vector.extract_strided_slice %165 {offsets = [0, 0], sizes = [8, 256], strides = [1, 1]} : vector<8x384xf32> to vector<8x256xf32>
    %167 = arith.negf %166 : vector<8x256xf32>
    %168 = math.exp %167 : vector<8x256xf32>
    %cst_44 = arith.constant 1.000000e+00 : f32
    %169 = vector.broadcast %cst_44 : f32 to vector<8x256xf32>
    %170 = arith.addf %169, %168 : vector<8x256xf32>
    %171 = arith.divf %169, %170 : vector<8x256xf32>
    %172 = vector.extract_strided_slice %165 {offsets = [0, 256], sizes = [8, 128], strides = [1, 1]} : vector<8x384xf32> to vector<8x128xf32>
    %173 = math.tanh %172 : vector<8x128xf32>
    %174 = vector.extract_strided_slice %159 {offsets = [0, 128], sizes = [8, 128], strides = [1, 1]} : vector<8x256xf32> to vector<8x128xf32>
    %175 = vector.extract_strided_slice %171 {offsets = [0, 0], sizes = [8, 128], strides = [1, 1]} : vector<8x256xf32> to vector<8x128xf32>
    %176 = arith.mulf %175, %174 : vector<8x128xf32>
    %177 = vector.extract_strided_slice %171 {offsets = [0, 128], sizes = [8, 128], strides = [1, 1]} : vector<8x256xf32> to vector<8x128xf32>
    %178 = arith.mulf %177, %173 : vector<8x128xf32>
    %179 = arith.subf %176, %178 : vector<8x128xf32>
    %180 = tpu.concatenate %173, %179 in 1 : vector<8x128xf32>, vector<8x128xf32> -> vector<8x256xf32>
    %c8_i32_45 = arith.constant 8 : i32
    %c0_46 = arith.constant 0 : index
    %c0_47 = arith.constant 0 : index
    %181 = vector.load %arg9[%c0_46, %c0_47] : memref<8x256xf32, #tpu.memory_space<vmem>>, vector<8x256xf32>
    tpu.vector_store %arg9[%c0_46, %c0_47], %180 {strides = array<i32>} : memref<8x256xf32, #tpu.memory_space<vmem>>, vector<8x256xf32>,
    %c0_i32_48 = arith.constant 0 : i32
    %182 = arith.cmpi eq, %arg1, %c0_i32_48 : i32
    %183 = arith.extui %182 : i1 to i32
    %c0_i32_49 = arith.constant 0 : i32
    %184 = arith.cmpi ne, %183, %c0_i32_49 : i32
    scf.if %184 {
      %c0_50 = arith.constant 0 : index
      %c0_51 = arith.constant 0 : index
      %185 = vector.load %arg9[%c0_50, %c0_51] : memref<8x256xf32, #tpu.memory_space<vmem>>, vector<8x128xf32>
      %c0_52 = arith.constant 0 : index
      %c0_53 = arith.constant 0 : index
      %186 = vector.load %arg6[%c0_52, %c0_53] : memref<128x128xf32, #tpu.memory_space<vmem>>, vector<128x128xf32>
      %cst_54 = arith.constant dense<0.000000e+00> : vector<8x128xf32>
      %187 = tpu.matmul %185, %186, %cst_54 {dimension_numbers = #tpu.dot_dimension_numbers<[1], [0], [0], [1], [0, 0, 1, 1], [], []>} : vector<8x128xf32>, vector<128x128xf32>, vector<8x128xf32> -> vector<8x128xf32>
      %c0_55 = arith.constant 0 : index
      %c0_56 = arith.constant 0 : index
      %188 = vector.load %arg7[%c0_55, %c0_56] : memref<1x128xf32, #tpu.memory_space<vmem>>, vector<1x128xf32>
      %189 = vector.broadcast %188 : vector<1x128xf32> to vector<8x128xf32>
      %190 = arith.addf %187, %189 : vector<8x128xf32>
      %c0_57 = arith.constant 0 : index
      %c0_58 = arith.constant 0 : index
      %191 = vector.load %arg8[%c0_57, %c0_58] : memref<8x128xf32, #tpu.memory_space<vmem>>, vector<8x128xf32>
      tpu.vector_store %arg8[%c0_57, %c0_58], %190 {strides = array<i32>} : memref<8x128xf32, #tpu.memory_space<vmem>>, vector<8x128xf32>,
    } else {
    }
    return
  }
  func.func @transform_0(%arg0: i32, %arg1: i32) -> (i32, i32, i32) {
    %c0_i32 = arith.constant 0 : i32
    %c0_i32_0 = arith.constant 0 : i32
    return %arg1, %arg0, %c0_i32 : i32, i32, i32
  }
  func.func @transform_1(%arg0: i32, %arg1: i32) -> (i32, i32) {
    %c0_i32 = arith.constant 0 : i32
    %c0_i32_0 = arith.constant 0 : i32
    %c0_i32_1 = arith.constant 0 : i32
    return %c0_i32, %c0_i32_0 : i32, i32
  }
  func.func @transform_2(%arg0: i32, %arg1: i32) -> (i32, i32) {
    %c0_i32 = arith.constant 0 : i32
    %c0_i32_0 = arith.constant 0 : i32
    %c0_i32_1 = arith.constant 0 : i32
    return %c0_i32, %c0_i32_0 : i32, i32
  }
  func.func @transform_3(%arg0: i32, %arg1: i32) -> (i32, i32) {
    %c0_i32 = arith.constant 0 : i32
    %c0_i32_0 = arith.constant 0 : i32
    %c0_i32_1 = arith.constant 0 : i32
    return %c0_i32, %c0_i32_0 : i32, i32
  }
  func.func @transform_4(%arg0: i32, %arg1: i32) -> (i32, i32) {
    %c0_i32 = arith.constant 0 : i32
    %c0_i32_0 = arith.constant 0 : i32
    %c0_i32_1 = arith.constant 0 : i32
    return %c0_i32, %c0_i32_0 : i32, i32
  }
  func.func @transform_5(%arg0: i32, %arg1: i32) -> (i32, i32) {
    %c0_i32 = arith.constant 0 : i32
    %c0_i32_0 = arith.constant 0 : i32
    %c0_i32_1 = arith.constant 0 : i32
    return %c0_i32, %c0_i32_0 : i32, i32
  }
  func.func @transform_6(%arg0: i32, %arg1: i32) -> (i32, i32) {
    %c0_i32 = arith.constant 0 : i32
    %c0_i32_0 = arith.constant 0 : i32
    return %arg0, %c0_i32 : i32, i32
  }
}

</mosaic_0001>

<llo_original>
// kernel: egsnp_forward.1
$region0: #{egsnp_forward.1}
  #allocation0 [shape = 'u32[]', space=smem, size = 0x4, offset = 0x4, fixed_abs, tag = 'smem constant byte address 0x4 - core index']
  #allocation1 [shape = 'u32[144,128]{1,0:T(1,128)}', space=vmem, size = 0x12000, scoped, tag = 'internal scratch']
  #allocation2 [shape = 'f32[8,256]{1,0:T(8,128)}', space=vmem, size = 0x2000, scoped, tag = 'scratch operand']
  #allocation3 [shape = 'f32[64,384]{1,0:T(8,128)}', space=vmem, size = 0x18000, scoped, tag = 'scratch operand']
  %s0 = inlined_call_operand.vmem [shape: f32[8,8,16], index: 0, kind: input, shape index: {}]
  %s1 = inlined_call_operand.hbm [shape: f32[16,384], index: 1, kind: input, shape index: {}]
  %s2 = inlined_call_operand.hbm [shape: f32[1,384], index: 2, kind: input, shape index: {}]
  %s3 = inlined_call_operand.hbm [shape: f32[256,384], index: 3, kind: input, shape index: {}]
  %s4 = inlined_call_operand.vmem [shape: f32[128,128], index: 4, kind: input, shape index: {}]
  %s5 = inlined_call_operand.hbm [shape: f32[1,128], index: 5, kind: input, shape index: {}]
  %s6 = inlined_call_operand.vmem [shape: f32[8,128], index: 6, kind: output, shape index: {}]
  %s7 = sld [smem:[#allocation0]]
  $region58: #{egsnp_forward.1} parent=0
    _
  %s9 = ssub.s32 1, %s7
  %s10 = scalar_select 0, %s9, %s7
  $region1: #{egsnp_forward.1} parent=0
    #allocation4 [shape = 'u8[24576]{0}', space=vmem, size = 0x6000, scoped, tag = 'input window, operand 1, single buffered']
    #allocation5 [shape = 's32[1]{0}', space=sflag, size = 0x4, scoped, tag = 'scoped memory for egsnp_forward.1']
    #allocation6 [shape = 'u8[1536]{0}', space=vmem, size = 0x800, scoped, tag = 'input window, operand 2, single buffered']
    #allocation7 [shape = 's32[1]{0}', space=sflag, size = 0x4, scoped, tag = 'scoped memory for egsnp_forward.1']
    #allocation8 [shape = 'u8[393216]{0}', space=vmem, size = 0x60000, scoped, tag = 'input window, operand 3, single buffered']
    #allocation9 [shape = 'u8[512]{0}', space=vmem, size = 0x400, scoped, tag = 'input window, operand 5, single buffered']
    #allocation10 [shape = 's32[1]{0}', space=sflag, size = 0x4, scoped, tag = 'scoped memory for egsnp_forward.1']
    %11 = vsyncpa [#allocation5], 0
    %12 = vsyncpa [#allocation7], 0
    %13 = vsyncpa [#allocation10], 0
    // Predicated region
    $region2: #{egsnp_forward.1} parent=1 // pred_check
      _
    $region3: #{egsnp_forward.1} parent=1 // pred_check_branch
      %15 = sbr.rel (0) target = $region5
    $region4: #{egsnp_forward.1} parent=1 // pred_region
      _
    $region5: #{egsnp_forward.1} parent=1 // pred_fallthru
      _
    // Predicated region
    $region6: #{egsnp_forward.1} parent=1 // pred_check
      _
    $region7: #{egsnp_forward.1} parent=1 // pred_check_branch
      %17 = sbr.rel (0) target = $region9
    $region8: #{egsnp_forward.1} parent=1 // pred_region
      %s19 = ssub.s32 768, 768
      %20 = vsyncadd [#allocation5], %s19
      %s21 = sshll.u32 [#allocation4], 4
      %s22 = int_to_ptr.vmem [resolvable:$true] %s21
      %27 = dma.hbm_to_vmem [thread:$0]  %s1, 768, %s22, [#allocation5], 384, 384, 24
    $region9: #{egsnp_forward.1} parent=1 // pred_fallthru
      _
    // Predicated region
    $region10: #{egsnp_forward.1} parent=1 // pred_check
      _
    $region11: #{egsnp_forward.1} parent=1 // pred_check_branch
      %29 = sbr.rel (0) target = $region13
    $region12: #{egsnp_forward.1} parent=1 // pred_region
      %s31 = ssub.s32 48, 48
      %32 = vsyncadd [#allocation7], %s31
      %s34 = sshll.u32 [#allocation6], 4
      %s35 = int_to_ptr.vmem [resolvable:$true] %s34
      %37 = dma.hbm_to_vmem [thread:$0]  %s2, 48, %s35, [#allocation7]
    $region13: #{egsnp_forward.1} parent=1 // pred_fallthru
      _
    // Predicated region
    $region14: #{egsnp_forward.1} parent=1 // pred_check
      _
    $region15: #{egsnp_forward.1} parent=1 // pred_check_branch
      %39 = sbr.rel (0) target = $region17
    $region16: #{egsnp_forward.1} parent=1 // pred_region
      %s41 = ssub.s32 12288, 12288
      %42 = vsyncadd [#allocation7], %s41
      %s43 = sshll.u32 [#allocation8], 4
      %s44 = int_to_ptr.vmem [resolvable:$true] %s43
      %49 = dma.hbm_to_vmem [thread:$0]  %s3, 12288, %s44, [#allocation7], 384, 384, 24
    $region17: #{egsnp_forward.1} parent=1 // pred_fallthru
      _
    // Predicated region
    $region18: #{egsnp_forward.1} parent=1 // pred_check
      _
    $region19: #{egsnp_forward.1} parent=1 // pred_check_branch
      %51 = sbr.rel (0) target = $region21
    $region20: #{egsnp_forward.1} parent=1 // pred_region
      _
    $region21: #{egsnp_forward.1} parent=1 // pred_fallthru
      _
    // Predicated region
    $region22: #{egsnp_forward.1} parent=1 // pred_check
      _
    $region23: #{egsnp_forward.1} parent=1 // pred_check_branch
      %53 = sbr.rel (0) target = $region25
    $region24: #{egsnp_forward.1} parent=1 // pred_region
      %s55 = ssub.s32 16, 16
      %56 = vsyncadd [#allocation10], %s55
      %s58 = sshll.u32 [#allocation9], 4
      %s59 = int_to_ptr.vmem [resolvable:$true] %s58
      %61 = dma.hbm_to_vmem [thread:$0]  %s5, 16, %s59, [#allocation10]
    $region25: #{egsnp_forward.1} parent=1 // pred_fallthru
      _
    // Predicated region
    $region26: #{egsnp_forward.1} parent=1 // pred_check
      _
    $region27: #{egsnp_forward.1} parent=1 // pred_check_branch
      %63 = sbr.rel (0) target = $region29
    $region28: #{egsnp_forward.1} parent=1 // pred_region
      %64 = dma.done [#allocation5], 768
    $region29: #{egsnp_forward.1} parent=1 // pred_fallthru
      _
    // Predicated region
    $region30: #{egsnp_forward.1} parent=1 // pred_check
      _
    $region31: #{egsnp_forward.1} parent=1 // pred_check_branch
      %66 = sbr.rel (0) target = $region33
    $region32: #{egsnp_forward.1} parent=1 // pred_region
      %67 = dma.done [#allocation7], 48
    $region33: #{egsnp_forward.1} parent=1 // pred_fallthru
      _
    // Predicated region
    $region34: #{egsnp_forward.1} parent=1 // pred_check
      _
    $region35: #{egsnp_forward.1} parent=1 // pred_check_branch
      %69 = sbr.rel (0) target = $region37
    $region36: #{egsnp_forward.1} parent=1 // pred_region
      %70 = dma.done [#allocation7], 12288
    $region37: #{egsnp_forward.1} parent=1 // pred_fallthru
      _
    // Predicated region
    $region38: #{egsnp_forward.1} parent=1 // pred_check
      _
    $region39: #{egsnp_forward.1} parent=1 // pred_check_branch
      %72 = sbr.rel (0) target = $region41
    $region40: #{egsnp_forward.1} parent=1 // pred_region
      %73 = dma.done [#allocation10], 16
    $region41: #{egsnp_forward.1} parent=1 // pred_fallthru
      _
    %p74 = scmp.eq.s32.totalorder 0, 0
    // Predicated region
    $region42: #{egsnp_forward.1} parent=1 // pred_check
      %p75 = pneg %p74
    $region43: #{egsnp_forward.1} parent=1 // pred_check_branch
      %77 = sbr.rel (%p75) target = $region45
    $region44: #{egsnp_forward.1} parent=1 // pred_region
      %78 = vst [vmem:[#allocation2] sm:$0xff] 0.0
      %79 = vst [vmem:[#allocation2 + $0x8] sm:$0xff] 0.0
    $region45: #{egsnp_forward.1} parent=1 // pred_fallthru
      _
    %v80 = vld [vmem:[%s0] sm:$0xff]
    %v81 = vld [vmem:[%s0 + $0x8] sm:$0xff]
    %v82 = vld [vmem:[%s0 + $0x10] sm:$0xff]
    %v83 = vld [vmem:[%s0 + $0x18] sm:$0xff]
    %v84 = vld [vmem:[%s0 + $0x20] sm:$0xff]
    %v85 = vld [vmem:[%s0 + $0x28] sm:$0xff]
    %v86 = vld [vmem:[%s0 + $0x30] sm:$0xff]
    %v87 = vld [vmem:[%s0 + $0x38] sm:$0xff]
    %v88 = vld [vmem:[#allocation4] sm:$0xff]
    %v89 = vld [vmem:[#allocation4 + $0x8] sm:$0xff]
    %v90 = vld [vmem:[#allocation4 + $0x10] sm:$0xff]
    %v91 = vld [vmem:[#allocation4 + $0x18] sm:$0xff]
    %v92 = vld [vmem:[#allocation4 + $0x20] sm:$0xff]
    %v93 = vld [vmem:[#allocation4 + $0x28] sm:$0xff]
    %v94 = vld [vmem:[#allocation6] sm:$0x7]
    %v96 = vlaneseq
    %v97 = vshrl.u32 %v96, 7
    %v98 = vsub.s32 0, %v97
    %v99 = vrot.slane %v94, %v98
    %v100 = vlaneseq
    %v101 = vshrl.u32 %v100, 7
    %v102 = vsub.s32 1, %v101
    %v103 = vrot.slane %v94, %v102
    %v104 = vlaneseq
    %v105 = vshrl.u32 %v104, 7
    %v106 = vsub.s32 2, %v105
    %v107 = vrot.slane %v94, %v106
    %vm111 = vcmask 130048
    %v113 = vsel %vm111, %v80, 0
    %v116 = vsel %vm111, %v81, 0
    %v119 = vsel %vm111, %v82, 0
    %v122 = vsel %vm111, %v83, 0
    %v125 = vsel %vm111, %v84, 0
    %v128 = vsel %vm111, %v85, 0
    %v131 = vsel %vm111, %v86, 0
    %v134 = vsel %vm111, %v87, 0
    %136 = vmatprep.subr.mxu0 %v89
    %137 = vmatpush1.msra.mxu0 %v88
    %138 = vmatprep.subr.mxu0 %v92
    %139 = vmatpush1.msra.mxu0 %v91
    %140 = vmatprep.subr.mxu0 0.0
    %141 = vmatpush1.msra.mxu0 0.0
    %142 = vmatprep.subr.mxu0 0.0
    %143 = vmatpush1.msra.mxu0 0.0
    %144 = vmatprep.subr.mxu0 0.0
    %145 = vmatpush1.msra.mxu0 0.0
    %146 = vmatprep.subr.mxu0 0.0
    %147 = vmatpush1.msra.mxu0 0.0
    %148 = vmatprep.subr.mxu0 0.0
    %149 = vmatpush1.msra.mxu0 0.0
    %150 = vmatprep.subr.mxu0 0.0
    %151 = vmatpush1.msra.mxu0 0.0
    %152 = vmatprep.subr.mxu0 0.0
    %153 = vmatpush1.msra.mxu0 0.0
    %154 = vmatprep.subr.mxu0 0.0
    %155 = vmatpush1.msra.mxu0 0.0
    %156 = vmatprep.subr.mxu0 0.0
    %157 = vmatpush1.msra.mxu0 0.0
    %158 = vmatprep.subr.mxu0 0.0
    %159 = vmatpush1.msra.mxu0 0.0
    %160 = vmatprep.subr.mxu0 0.0
    %161 = vmatpush1.msra.mxu0 0.0
    %162 = vmatprep.subr.mxu0 0.0
    %163 = vmatpush1.msra.mxu0 0.0
    %164 = vmatprep.subr.mxu0 0.0
    %165 = vmatpush1.msra.mxu0 0.0
    %166 = vmatprep.subr.mxu0 0.0
    %167 = vmatpush1.msra.mxu0 0.0
    %168 = vmatprep.subr.mxu0 0.0
    %169 = vmatpush1.msra.mxu0 0.0
    %170 = vmatprep.subr.mxu0 0.0
    %171 = vmatpush1.msra.mxu0 0.0
    %172 = vmatprep.subr.mxu0 0.0
    %173 = vmatpush1.msra.mxu0 0.0
    %174 = vmatprep.subr.mxu0 0.0
    %175 = vmatpush1.msra.mxu0 0.0
    %176 = vmatprep.subr.mxu0 0.0
    %177 = vmatpush1.msra.mxu0 0.0
    %178 = vmatprep.subr.mxu0 0.0
    %179 = vmatpush1.msra.mxu0 0.0
    %180 = vmatprep.subr.mxu0 0.0
    %181 = vmatpush1.msra.mxu0 0.0
    %182 = vmatprep.subr.mxu0 0.0
    %183 = vmatpush1.msra.mxu0 0.0
    %184 = vmatprep.subr.mxu0 0.0
    %185 = vmatpush1.msra.mxu0 0.0
    %186 = vmatprep.subr.mxu0 0.0
    %187 = vmatpush1.msra.mxu0 0.0
    %188 = vmatprep.subr.mxu0 0.0
    %189 = vmatpush1.msra.mxu0 0.0
    %190 = vmatprep.subr.mxu0 0.0
    %191 = vmatpush1.msra.mxu0 0.0
    %192 = vmatprep.subr.mxu0 0.0
    %193 = vmatpush1.msra.mxu0 0.0
    %194 = vmatprep.subr.mxu0 0.0
    %195 = vmatpush1.msra.mxu0 0.0
    %196 = vmatprep.subr.mxu0 0.0
    %197 = vmatpush1.msra.mxu0 0.0
    %198 = vmatprep.subr.mxu0 0.0
    %199 = vmatpush1.msra.mxu0 0.0
    %200 = vmatprep.mubr.f32.mxu0 0.0
    %201 = vmatmul.mubr.f32.gmra.mrb[0].mxu0 %v113
    %v202 = vpop.f32.mrb[0].mxu0
    %v203 = vadd.f32 %v99, %v202
    %v204 = vpop.f32.mrb[0].mxu0
    %v205 = vadd.f32 %v103, %v204
    %206 = vmatprep.mubr.f32.mxu0 0.0
    %207 = vmatmul.mubr.f32.gmra.mrb[0].mxu0 %v116
    %v208 = vpop.f32.mrb[0].mxu0
    %v209 = vadd.f32 %v99, %v208
    %v210 = vpop.f32.mrb[0].mxu0
    %v211 = vadd.f32 %v103, %v210
    %212 = vmatprep.mubr.f32.mxu0 0.0
    %213 = vmatmul.mubr.f32.gmra.mrb[0].mxu0 %v119
    %v214 = vpop.f32.mrb[0].mxu0
    %v215 = vadd.f32 %v99, %v214
    %v216 = vpop.f32.mrb[0].mxu0
    %v217 = vadd.f32 %v103, %v216
    %218 = vmatprep.mubr.f32.mxu0 0.0
    %219 = vmatmul.mubr.f32.gmra.mrb[0].mxu0 %v122
    %v220 = vpop.f32.mrb[0].mxu0
    %v221 = vadd.f32 %v99, %v220
    %v222 = vpop.f32.mrb[0].mxu0
    %v223 = vadd.f32 %v103, %v222
    %224 = vmatprep.mubr.f32.mxu0 0.0
    %225 = vmatmul.mubr.f32.gmra.mrb[0].mxu0 %v125
    %v226 = vpop.f32.mrb[0].mxu0
    %v227 = vadd.f32 %v99, %v226
    %v228 = vpop.f32.mrb[0].mxu0
    %v229 = vadd.f32 %v103, %v228
    %230 = vmatprep.mubr.f32.mxu0 0.0
    %231 = vmatmul.mubr.f32.gmra.mrb[0].mxu0 %v128
    %v232 = vpop.f32.mrb[0].mxu0
    %v233 = vadd.f32 %v99, %v232
    %v234 = vpop.f32.mrb[0].mxu0
    %v235 = vadd.f32 %v103, %v234
    %236 = vmatprep.mubr.f32.mxu0 0.0
    %237 = vmatmul.mubr.f32.gmra.mrb[0].mxu0 %v131
    %v238 = vpop.f32.mrb[0].mxu0
    %v239 = vadd.f32 %v99, %v238
    %v240 = vpop.f32.mrb[0].mxu0
    %v241 = vadd.f32 %v103, %v240
    %242 = vmatprep.mubr.f32.mxu0 0.0
    %243 = vmatmul.mubr.f32.gmra.mrb[0].mxu0 %v134
    %v244 = vpop.f32.mrb[0].mxu0
    %v245 = vadd.f32 %v99, %v244
    %v246 = vpop.f32.mrb[0].mxu0
    %v247 = vadd.f32 %v103, %v246
    %248 = vdwg.mxu0
    %249 = vmatprep.subr.mxu0 0.0
    %250 = vmatpush1.msra.mxu0 %v90
    %251 = vmatprep.subr.mxu0 0.0
    %252 = vmatpush1.msra.mxu0 %v93
    %253 = vmatprep.subr.mxu0 0.0
    %254 = vmatpush1.msra.mxu0 0.0
    %255 = vmatprep.subr.mxu0 0.0
    %256 = vmatpush1.msra.mxu0 0.0
    %257 = vmatprep.subr.mxu0 0.0
    %258 = vmatpush1.msra.mxu0 0.0
    %259 = vmatprep.subr.mxu0 0.0
    %260 = vmatpush1.msra.mxu0 0.0
    %261 = vmatprep.subr.mxu0 0.0
    %262 = vmatpush1.msra.mxu0 0.0
    %263 = vmatprep.subr.mxu0 0.0
    %264 = vmatpush1.msra.mxu0 0.0
    %265 = vmatprep.subr.mxu0 0.0
    %266 = vmatpush1.msra.mxu0 0.0
    %267 = vmatprep.subr.mxu0 0.0
    %268 = vmatpush1.msra.mxu0 0.0
    %269 = vmatprep.subr.mxu0 0.0
    %270 = vmatpush1.msra.mxu0 0.0
    %271 = vmatprep.subr.mxu0 0.0
    %272 = vmatpush1.msra.mxu0 0.0
    %273 = vmatprep.subr.mxu0 0.0
    %274 = vmatpush1.msra.mxu0 0.0
    %275 = vmatprep.subr.mxu0 0.0
    %276 = vmatpush1.msra.mxu0 0.0
    %277 = vmatprep.subr.mxu0 0.0
    %278 = vmatpush1.msra.mxu0 0.0
    %279 = vmatprep.subr.mxu0 0.0
    %280 = vmatpush1.msra.mxu0 0.0
    %281 = vmatprep.subr.mxu0 0.0
    %282 = vmatpush1.msra.mxu0 0.0
    %283 = vmatprep.subr.mxu0 0.0
    %284 = vmatpush1.msra.mxu0 0.0
    %285 = vmatprep.subr.mxu0 0.0
    %286 = vmatpush1.msra.mxu0 0.0
    %287 = vmatprep.subr.mxu0 0.0
    %288 = vmatpush1.msra.mxu0 0.0
    %289 = vmatprep.subr.mxu0 0.0
    %290 = vmatpush1.msra.mxu0 0.0
    %291 = vmatprep.subr.mxu0 0.0
    %292 = vmatpush1.msra.mxu0 0.0
    %293 = vmatprep.subr.mxu0 0.0
    %294 = vmatpush1.msra.mxu0 0.0
    %295 = vmatprep.subr.mxu0 0.0
    %296 = vmatpush1.msra.mxu0 0.0
    %297 = vmatprep.subr.mxu0 0.0
    %298 = vmatpush1.msra.mxu0 0.0
    %299 = vmatprep.subr.mxu0 0.0
    %300 = vmatpush1.msra.mxu0 0.0
    %301 = vmatprep.subr.mxu0 0.0
    %302 = vmatpush1.msra.mxu0 0.0
    %303 = vmatprep.subr.mxu0 0.0
    %304 = vmatpush1.msra.mxu0 0.0
    %305 = vmatprep.subr.mxu0 0.0
    %306 = vmatpush1.msra.mxu0 0.0
    %307 = vmatprep.subr.mxu0 0.0
    %308 = vmatpush1.msra.mxu0 0.0
    %309 = vmatprep.subr.mxu0 0.0
    %310 = vmatpush1.msra.mxu0 0.0
    %311 = vmatprep.subr.mxu0 0.0
    %312 = vmatpush1.msra.mxu0 0.0
    %313 = vmatprep.mubr.f32.mxu0 0.0
    %314 = vmatmul.mubr.f32.gmra.mrb[0].mxu0 %v113
    %v315 = vpop.f32.mrb[0].mxu0
    %v316 = vadd.f32 %v107, %v315
    %v317 = vpop.f32.mrb[0].mxu0
    %318 = vmatprep.mubr.f32.mxu0 0.0
    %319 = vmatmul.mubr.f32.gmra.mrb[0].mxu0 %v116
    %v320 = vpop.f32.mrb[0].mxu0
    %v321 = vadd.f32 %v107, %v320
    %v322 = vpop.f32.mrb[0].mxu0
    %323 = vmatprep.mubr.f32.mxu0 0.0
    %324 = vmatmul.mubr.f32.gmra.mrb[0].mxu0 %v119
    %v325 = vpop.f32.mrb[0].mxu0
    %v326 = vadd.f32 %v107, %v325
    %v327 = vpop.f32.mrb[0].mxu0
    %328 = vmatprep.mubr.f32.mxu0 0.0
    %329 = vmatmul.mubr.f32.gmra.mrb[0].mxu0 %v122
    %v330 = vpop.f32.mrb[0].mxu0
    %v331 = vadd.f32 %v107, %v330
    %v332 = vpop.f32.mrb[0].mxu0
    %333 = vmatprep.mubr.f32.mxu0 0.0
    %334 = vmatmul.mubr.f32.gmra.mrb[0].mxu0 %v125
    %v335 = vpop.f32.mrb[0].mxu0
    %v336 = vadd.f32 %v107, %v335
    %v337 = vpop.f32.mrb[0].mxu0
    %338 = vmatprep.mubr.f32.mxu0 0.0
    %339 = vmatmul.mubr.f32.gmra.mrb[0].mxu0 %v128
    %v340 = vpop.f32.mrb[0].mxu0
    %v341 = vadd.f32 %v107, %v340
    %v342 = vpop.f32.mrb[0].mxu0
    %343 = vmatprep.mubr.f32.mxu0 0.0
    %344 = vmatmul.mubr.f32.gmra.mrb[0].mxu0 %v131
    %v345 = vpop.f32.mrb[0].mxu0
    %v346 = vadd.f32 %v107, %v345
    %v347 = vpop.f32.mrb[0].mxu0
    %348 = vmatprep.mubr.f32.mxu0 0.0
    %349 = vmatmul.mubr.f32.gmra.mrb[0].mxu0 %v134
    %v350 = vpop.f32.mrb[0].mxu0
    %v351 = vadd.f32 %v107, %v350
    %v352 = vpop.f32.mrb[0].mxu0
    %353 = vdwg.mxu0
    %354 = vst [vmem:[#allocation3] sm:$0xff] %v203
    %355 = vst [vmem:[#allocation3 + $0x8] sm:$0xff] %v205
    %356 = vst [vmem:[#allocation3 + $0x10] sm:$0xff] %v316
    %357 = vst [vmem:[#allocation3 + $0x18] sm:$0xff] %v209
    %358 = vst [vmem:[#allocation3 + $0x20] sm:$0xff] %v211
    %359 = vst [vmem:[#allocation3 + $0x28] sm:$0xff] %v321
    %360 = vst [vmem:[#allocation3 + $0x30] sm:$0xff] %v215
    %361 = vst [vmem:[#allocation3 + $0x38] sm:$0xff] %v217
    %362 = vst [vmem:[#allocation3 + $0x40] sm:$0xff] %v326
    %363 = vst [vmem:[#allocation3 + $0x48] sm:$0xff] %v221
    %364 = vst [vmem:[#allocation3 + $0x50] sm:$0xff] %v223
    %365 = vst [vmem:[#allocation3 + $0x58] sm:$0xff] %v331
    %366 = vst [vmem:[#allocation3 + $0x60] sm:$0xff] %v227
    %367 = vst [vmem:[#allocation3 + $0x68] sm:$0xff] %v229
    %368 = vst [vmem:[#allocation3 + $0x70] sm:$0xff] %v336
    %369 = vst [vmem:[#allocation3 + $0x78] sm:$0xff] %v233
    %370 = vst [vmem:[#allocation3 + $0x80] sm:$0xff] %v235
    %371 = vst [vmem:[#allocation3 + $0x88] sm:$0xff] %v341
    %372 = vst [vmem:[#allocation3 + $0x90] sm:$0xff] %v239
    %373 = vst [vmem:[#allocation3 + $0x98] sm:$0xff] %v241
    %374 = vst [vmem:[#allocation3 + $0xa0] sm:$0xff] %v346
    %375 = vst [vmem:[#allocation3 + $0xa8] sm:$0xff] %v245
    %376 = vst [vmem:[#allocation3 + $0xb0] sm:$0xff] %v247
    %377 = vst [vmem:[#allocation3 + $0xb8] sm:$0xff] %v351
    %v378 = vld [vmem:[#allocation8] sm:$0xff]
    %v379 = vld [vmem:[#allocation8 + $0x8] sm:$0xff]
    %v380 = vld [vmem:[#allocation8 + $0x10] sm:$0xff]
    %v381 = vld [vmem:[#allocation8 + $0x18] sm:$0xff]
    %v382 = vld [vmem:[#allocation8 + $0x20] sm:$0xff]
    %v383 = vld [vmem:[#allocation8 + $0x28] sm:$0xff]
    %v384 = vld [vmem:[#allocation8 + $0x30] sm:$0xff]
    %v385 = vld [vmem:[#allocation8 + $0x38] sm:$0xff]
    %v386 = vld [vmem:[#allocation8 + $0x40] sm:$0xff]
    %v387 = vld [vmem:[#allocation8 + $0x48] sm:$0xff]
    %v388 = vld [vmem:[#allocation8 + $0x50] sm:$0xff]
    %v389 = vld [vmem:[#allocation8 + $0x58] sm:$0xff]
    %v390 = vld [vmem:[#allocation8 + $0x60] sm:$0xff]
    %v391 = vld [vmem:[#allocation8 + $0x68] sm:$0xff]
    %v392 = vld [vmem:[#allocation8 + $0x70] sm:$0xff]
    %v393 = vld [vmem:[#allocation8 + $0x78] sm:$0xff]
    %v394 = vld [vmem:[#allocation8 + $0x80] sm:$0xff]
    %v395 = vld [vmem:[#allocation8 + $0x88] sm:$0xff]
    %v396 = vld [vmem:[#allocation8 + $0x90] sm:$0xff]
    %v397 = vld [vmem:[#allocation8 + $0x98] sm:$0xff]
    %v398 = vld [vmem:[#allocation8 + $0xa0] sm:$0xff]
    %v399 = vld [vmem:[#allocation8 + $0xa8] sm:$0xff]
    %v400 = vld [vmem:[#allocation8 + $0xb0] sm:$0xff]
    %v401 = vld [vmem:[#allocation8 + $0xb8] sm:$0xff]
    %v402 = vld [vmem:[#allocation8 + $0xc0] sm:$0xff]
    %v403 = vld [vmem:[#allocation8 + $0xc8] sm:$0xff]
    %v404 = vld [vmem:[#allocation8 + $0xd0] sm:$0xff]
    %v405 = vld [vmem:[#allocation8 + $0xd8] sm:$0xff]
    %v406 = vld [vmem:[#allocation8 + $0xe0] sm:$0xff]
    %v407 = vld [vmem:[#allocation8 + $0xe8] sm:$0xff]
    %v408 = vld [vmem:[#allocation8 + $0xf0] sm:$0xff]
    %v409 = vld [vmem:[#allocation8 + $0xf8] sm:$0xff]
    %v410 = vld [vmem:[#allocation8 + $0x100] sm:$0xff]
    %v411 = vld [vmem:[#allocation8 + $0x108] sm:$0xff]
    %v412 = vld [vmem:[#allocation8 + $0x110] sm:$0xff]
    %v413 = vld [vmem:[#allocation8 + $0x118] sm:$0xff]
    %v414 = vld [vmem:[#allocation8 + $0x120] sm:$0xff]
    %v415 = vld [vmem:[#allocation8 + $0x128] sm:$0xff]
    %v416 = vld [vmem:[#allocation8 + $0x130] sm:$0xff]
    %v417 = vld [vmem:[#allocation8 + $0x138] sm:$0xff]
    %v418 = vld [vmem:[#allocation8 + $0x140] sm:$0xff]
    %v419 = vld [vmem:[#allocation8 + $0x148] sm:$0xff]
    %v420 = vld [vmem:[#allocation8 + $0x150] sm:$0xff]
    %v421 = vld [vmem:[#allocation8 + $0x158] sm:$0xff]
    %v422 = vld [vmem:[#allocation8 + $0x160] sm:$0xff]
    %v423 = vld [vmem:[#allocation8 + $0x168] sm:$0xff]
    %v424 = vld [vmem:[#allocation8 + $0x170] sm:$0xff]
    %v425 = vld [vmem:[#allocation8 + $0x178] sm:$0xff]
    %v426 = vld [vmem:[#allocation8 + $0x180] sm:$0xff]
    %v427 = vld [vmem:[#allocation8 + $0x188] sm:$0xff]
    %v428 = vld [vmem:[#allocation8 + $0x190] sm:$0xff]
    %v429 = vld [vmem:[#allocation8 + $0x198] sm:$0xff]
    %v430 = vld [vmem:[#allocation8 + $0x1a0] sm:$0xff]
    %v431 = vld [vmem:[#allocation8 + $0x1a8] sm:$0xff]
    %v432 = vld [vmem:[#allocation8 + $0x1b0] sm:$0xff]
    %v433 = vld [vmem:[#allocation8 + $0x1b8] sm:$0xff]
    %v434 = vld [vmem:[#allocation8 + $0x1c0] sm:$0xff]
    %v435 = vld [vmem:[#allocation8 + $0x1c8] sm:$0xff]
    %v436 = vld [vmem:[#allocation8 + $0x1d0] sm:$0xff]
    %v437 = vld [vmem:[#allocation8 + $0x1d8] sm:$0xff]
    %v438 = vld [vmem:[#allocation8 + $0x1e0] sm:$0xff]
    %v439 = vld [vmem:[#allocation8 + $0x1e8] sm:$0xff]
    %v440 = vld [vmem:[#allocation8 + $0x1f0] sm:$0xff]
    %v441 = vld [vmem:[#allocation8 + $0x1f8] sm:$0xff]
    %v442 = vld [vmem:[#allocation8 + $0x200] sm:$0xff]
    %v443 = vld [vmem:[#allocation8 + $0x208] sm:$0xff]
    %v444 = vld [vmem:[#allocation8 + $0x210] sm:$0xff]
    %v445 = vld [vmem:[#allocation8 + $0x218] sm:$0xff]
    %v446 = vld [vmem:[#allocation8 + $0x220] sm:$0xff]
    %v447 = vld [vmem:[#allocation8 + $0x228] sm:$0xff]
    %v448 = vld [vmem:[#allocation8 + $0x230] sm:$0xff]
    %v449 = vld [vmem:[#allocation8 + $0x238] sm:$0xff]
    %v450 = vld [vmem:[#allocation8 + $0x240] sm:$0xff]
    %v451 = vld [vmem:[#allocation8 + $0x248] sm:$0xff]
    %v452 = vld [vmem:[#allocation8 + $0x250] sm:$0xff]
    %v453 = vld [vmem:[#allocation8 + $0x258] sm:$0xff]
    %v454 = vld [vmem:[#allocation8 + $0x260] sm:$0xff]
    %v455 = vld [vmem:[#allocation8 + $0x268] sm:$0xff]
    %v456 = vld [vmem:[#allocation8 + $0x270] sm:$0xff]
    %v457 = vld [vmem:[#allocation8 + $0x278] sm:$0xff]
    %v458 = vld [vmem:[#allocation8 + $0x280] sm:$0xff]
    %v459 = vld [vmem:[#allocation8 + $0x288] sm:$0xff]
    %v460 = vld [vmem:[#allocation8 + $0x290] sm:$0xff]
    %v461 = vld [vmem:[#allocation8 + $0x298] sm:$0xff]
    %v462 = vld [vmem:[#allocation8 + $0x2a0] sm:$0xff]
    %v463 = vld [vmem:[#allocation8 + $0x2a8] sm:$0xff]
    %v464 = vld [vmem:[#allocation8 + $0x2b0] sm:$0xff]
    %v465 = vld [vmem:[#allocation8 + $0x2b8] sm:$0xff]
    %v466 = vld [vmem:[#allocation8 + $0x2c0] sm:$0xff]
    %v467 = vld [vmem:[#allocation8 + $0x2c8] sm:$0xff]
    %v468 = vld [vmem:[#allocation8 + $0x2d0] sm:$0xff]
    %v469 = vld [vmem:[#allocation8 + $0x2d8] sm:$0xff]
    %v470 = vld [vmem:[#allocation8 + $0x2e0] sm:$0xff]
    %v471 = vld [vmem:[#allocation8 + $0x2e8] sm:$0xff]
    %v472 = vld [vmem:[#allocation8 + $0x2f0] sm:$0xff]
    %v473 = vld [vmem:[#allocation8 + $0x2f8] sm:$0xff]
    %v474 = vld [vmem:[#allocation2] sm:$0xff]
    %v475 = vld [vmem:[#allocation2 + $0x8] sm:$0xff]
    %s476 = smul.u32 0, 3
    %s477 = smul.addr %s476, 8
    %s478 = scalar_lea.vmem [#allocation3], %s477
    %v479 = vld [vmem:[%s478] sm:$0xff]
    %v480 = vld [vmem:[%s478 + $0x8] sm:$0xff]
    %v481 = vld [vmem:[%s478 + $0x10] sm:$0xff]
    %482 = vmatprep.subr.mxu0 %v379
    %483 = vmatpush1.msra.mxu0 %v378
    %484 = vmatprep.subr.mxu0 %v382
    %485 = vmatpush1.msra.mxu0 %v381
    %486 = vmatprep.subr.mxu0 %v385
    %487 = vmatpush1.msra.mxu0 %v384
    %488 = vmatprep.subr.mxu0 %v388
    %489 = vmatpush1.msra.mxu0 %v387
    %490 = vmatprep.subr.mxu0 %v391
    %491 = vmatpush1.msra.mxu0 %v390
    %492 = vmatprep.subr.mxu0 %v394
    %493 = vmatpush1.msra.mxu0 %v393
    %494 = vmatprep.subr.mxu0 %v397
    %495 = vmatpush1.msra.mxu0 %v396
    %496 = vmatprep.subr.mxu0 %v400
    %497 = vmatpush1.msra.mxu0 %v399
    %498 = vmatprep.subr.mxu0 %v403
    %499 = vmatpush1.msra.mxu0 %v402
    %500 = vmatprep.subr.mxu0 %v406
    %501 = vmatpush1.msra.mxu0 %v405
    %502 = vmatprep.subr.mxu0 %v409
    %503 = vmatpush1.msra.mxu0 %v408
    %504 = vmatprep.subr.mxu0 %v412
    %505 = vmatpush1.msra.mxu0 %v411
    %506 = vmatprep.subr.mxu0 %v415
    %507 = vmatpush1.msra.mxu0 %v414
    %508 = vmatprep.subr.mxu0 %v418
    %509 = vmatpush1.msra.mxu0 %v417
    %510 = vmatprep.subr.mxu0 %v421
    %511 = vmatpush1.msra.mxu0 %v420
    %512 = vmatprep.subr.mxu0 %v424
    %513 = vmatpush1.msra.mxu0 %v423
    %514 = vmatprep.subr.mxu0 %v427
    %515 = vmatpush1.msra.mxu0 %v426
    %516 = vmatprep.subr.mxu0 %v430
    %517 = vmatpush1.msra.mxu0 %v429
    %518 = vmatprep.subr.mxu0 %v433
    %519 = vmatpush1.msra.mxu0 %v432
    %520 = vmatprep.subr.mxu0 %v436
    %521 = vmatpush1.msra.mxu0 %v435
    %522 = vmatprep.subr.mxu0 %v439
    %523 = vmatpush1.msra.mxu0 %v438
    %524 = vmatprep.subr.mxu0 %v442
    %525 = vmatpush1.msra.mxu0 %v441
    %526 = vmatprep.subr.mxu0 %v445
    %527 = vmatpush1.msra.mxu0 %v444
    %528 = vmatprep.subr.mxu0 %v448
    %529 = vmatpush1.msra.mxu0 %v447
    %530 = vmatprep.subr.mxu0 %v451
    %531 = vmatpush1.msra.mxu0 %v450
    %532 = vmatprep.subr.mxu0 %v454
    %533 = vmatpush1.msra.mxu0 %v453
    %534 = vmatprep.subr.mxu0 %v457
    %535 = vmatpush1.msra.mxu0 %v456
    %536 = vmatprep.subr.mxu0 %v460
    %537 = vmatpush1.msra.mxu0 %v459
    %538 = vmatprep.subr.mxu0 %v463
    %539 = vmatpush1.msra.mxu0 %v462
    %540 = vmatprep.subr.mxu0 %v466
    %541 = vmatpush1.msra.mxu0 %v465
    %542 = vmatprep.subr.mxu0 %v469
    %543 = vmatpush1.msra.mxu0 %v468
    %544 = vmatprep.subr.mxu0 %v472
    %545 = vmatpush1.msra.mxu0 %v471
    %546 = vmatprep.mubr.f32.mxu0 %v475
    %547 = vmatmul.mubr.f32.gmra.mrb[0].mxu0 %v474
    %v548 = vpop.f32.mrb[0].mxu0
    %v549 = vadd.f32 0.0, %v548
    %v550 = vpop.f32.mrb[0].mxu0
    %v551 = vadd.f32 0.0, %v550
    %552 = vdwg.mxu0
    %553 = vmatprep.subr.mxu0 0.0
    %554 = vmatpush1.msra.mxu0 %v380
    %555 = vmatprep.subr.mxu0 0.0
    %556 = vmatpush1.msra.mxu0 %v383
    %557 = vmatprep.subr.mxu0 0.0
    %558 = vmatpush1.msra.mxu0 %v386
    %559 = vmatprep.subr.mxu0 0.0
    %560 = vmatpush1.msra.mxu0 %v389
    %561 = vmatprep.subr.mxu0 0.0
    %562 = vmatpush1.msra.mxu0 %v392
    %563 = vmatprep.subr.mxu0 0.0
    %564 = vmatpush1.msra.mxu0 %v395
    %565 = vmatprep.subr.mxu0 0.0
    %566 = vmatpush1.msra.mxu0 %v398
    %567 = vmatprep.subr.mxu0 0.0
    %568 = vmatpush1.msra.mxu0 %v401
    %569 = vmatprep.subr.mxu0 0.0
    %570 = vmatpush1.msra.mxu0 %v404
    %571 = vmatprep.subr.mxu0 0.0
    %572 = vmatpush1.msra.mxu0 %v407
    %573 = vmatprep.subr.mxu0 0.0
    %574 = vmatpush1.msra.mxu0 %v410
    %575 = vmatprep.subr.mxu0 0.0
    %576 = vmatpush1.msra.mxu0 %v413
    %577 = vmatprep.subr.mxu0 0.0
    %578 = vmatpush1.msra.mxu0 %v416
    %579 = vmatprep.subr.mxu0 0.0
    %580 = vmatpush1.msra.mxu0 %v419
    %581 = vmatprep.subr.mxu0 0.0
    %582 = vmatpush1.msra.mxu0 %v422
    %583 = vmatprep.subr.mxu0 0.0
    %584 = vmatpush1.msra.mxu0 %v425
    %585 = vmatprep.subr.mxu0 0.0
    %586 = vmatpush1.msra.mxu0 %v428
    %587 = vmatprep.subr.mxu0 0.0
    %588 = vmatpush1.msra.mxu0 %v431
    %589 = vmatprep.subr.mxu0 0.0
    %590 = vmatpush1.msra.mxu0 %v434
    %591 = vmatprep.subr.mxu0 0.0
    %592 = vmatpush1.msra.mxu0 %v437
    %593 = vmatprep.subr.mxu0 0.0
    %594 = vmatpush1.msra.mxu0 %v440
    %595 = vmatprep.subr.mxu0 0.0
    %596 = vmatpush1.msra.mxu0 %v443
    %597 = vmatprep.subr.mxu0 0.0
    %598 = vmatpush1.msra.mxu0 %v446
    %599 = vmatprep.subr.mxu0 0.0
    %600 = vmatpush1.msra.mxu0 %v449
    %601 = vmatprep.subr.mxu0 0.0
    %602 = vmatpush1.msra.mxu0 %v452
    %603 = vmatprep.subr.mxu0 0.0
    %604 = vmatpush1.msra.mxu0 %v455
    %605 = vmatprep.subr.mxu0 0.0
    %606 = vmatpush1.msra.mxu0 %v458
    %607 = vmatprep.subr.mxu0 0.0
    %608 = vmatpush1.msra.mxu0 %v461
    %609 = vmatprep.subr.mxu0 0.0
    %610 = vmatpush1.msra.mxu0 %v464
    %611 = vmatprep.subr.mxu0 0.0
    %612 = vmatpush1.msra.mxu0 %v467
    %613 = vmatprep.subr.mxu0 0.0
    %614 = vmatpush1.msra.mxu0 %v470
    %615 = vmatprep.subr.mxu0 0.0
    %616 = vmatpush1.msra.mxu0 %v473
    %617 = vmatprep.mubr.f32.mxu0 %v475
    %618 = vmatmul.mubr.f32.gmra.mrb[0].mxu0 %v474
    %v619 = vpop.f32.mrb[0].mxu0
    %v620 = vadd.f32 0.0, %v619
    %v621 = vpop.f32.mrb[0].mxu0
    %622 = vdwg.mxu0
    %v623 = vadd.f32 %v479, %v549
    %v624 = vadd.f32 %v480, %v551
    %v625 = vadd.f32 %v481, %v620
    %v626 = vxor.u32 %v623, 2147483648
    %v627 = vxor.u32 %v624, 2147483648
    %v628 = vmul.f32 %v626, 1.442695
    %v629 = vpow.pop %v628
    %v630 = vmul.f32 %v627, 1.442695
    %v631 = vpow.pop %v630
    %v632 = vadd.f32 %v629, 1.0
    %v633 = vadd.f32 %v631, 1.0
    %v634 = vrcp.pop %v632
    %v635 = vmul.f32 1.0, %v634
    %v636 = vrcp.pop %v633
    %v637 = vmul.f32 1.0, %v636
    %v638 = vtanh.pop %v625
    %v639 = vmul.f32 %v635, %v475
    %v640 = vmul.f32 %v637, %v638
    %v641 = vsub.f32 %v639, %v640
    %s642 = smul.u32 1, 3
    %s643 = smul.addr %s642, 8
    %s644 = scalar_lea.vmem [#allocation3], %s643
    %v645 = vld [vmem:[%s644] sm:$0xff]
    %v646 = vld [vmem:[%s644 + $0x8] sm:$0xff]
    %v647 = vld [vmem:[%s644 + $0x10] sm:$0xff]
    %648 = vmatprep.subr.mxu0 %v379
    %649 = vmatpush1.msra.mxu0 %v378
    %650 = vmatprep.subr.mxu0 %v382
    %651 = vmatpush1.msra.mxu0 %v381
    %652 = vmatprep.subr.mxu0 %v385
    %653 = vmatpush1.msra.mxu0 %v384
    %654 = vmatprep.subr.mxu0 %v388
    %655 = vmatpush1.msra.mxu0 %v387
    %656 = vmatprep.subr.mxu0 %v391
    %657 = vmatpush1.msra.mxu0 %v390
    %658 = vmatprep.subr.mxu0 %v394
    %659 = vmatpush1.msra.mxu0 %v393
    %660 = vmatprep.subr.mxu0 %v397
    %661 = vmatpush1.msra.mxu0 %v396
    %662 = vmatprep.subr.mxu0 %v400
    %663 = vmatpush1.msra.mxu0 %v399
    %664 = vmatprep.subr.mxu0 %v403
    %665 = vmatpush1.msra.mxu0 %v402
    %666 = vmatprep.subr.mxu0 %v406
    %667 = vmatpush1.msra.mxu0 %v405
    %668 = vmatprep.subr.mxu0 %v409
    %669 = vmatpush1.msra.mxu0 %v408
    %670 = vmatprep.subr.mxu0 %v412
    %671 = vmatpush1.msra.mxu0 %v411
    %672 = vmatprep.subr.mxu0 %v415
    %673 = vmatpush1.msra.mxu0 %v414
    %674 = vmatprep.subr.mxu0 %v418
    %675 = vmatpush1.msra.mxu0 %v417
    %676 = vmatprep.subr.mxu0 %v421
    %677 = vmatpush1.msra.mxu0 %v420
    %678 = vmatprep.subr.mxu0 %v424
    %679 = vmatpush1.msra.mxu0 %v423
    %680 = vmatprep.subr.mxu0 %v427
    %681 = vmatpush1.msra.mxu0 %v426
    %682 = vmatprep.subr.mxu0 %v430
    %683 = vmatpush1.msra.mxu0 %v429
    %684 = vmatprep.subr.mxu0 %v433
    %685 = vmatpush1.msra.mxu0 %v432
    %686 = vmatprep.subr.mxu0 %v436
    %687 = vmatpush1.msra.mxu0 %v435
    %688 = vmatprep.subr.mxu0 %v439
    %689 = vmatpush1.msra.mxu0 %v438
    %690 = vmatprep.subr.mxu0 %v442
    %691 = vmatpush1.msra.mxu0 %v441
    %692 = vmatprep.subr.mxu0 %v445
    %693 = vmatpush1.msra.mxu0 %v444
    %694 = vmatprep.subr.mxu0 %v448
    %695 = vmatpush1.msra.mxu0 %v447
    %696 = vmatprep.subr.mxu0 %v451
    %697 = vmatpush1.msra.mxu0 %v450
    %698 = vmatprep.subr.mxu0 %v454
    %699 = vmatpush1.msra.mxu0 %v453
    %700 = vmatprep.subr.mxu0 %v457
    %701 = vmatpush1.msra.mxu0 %v456
    %702 = vmatprep.subr.mxu0 %v460
    %703 = vmatpush1.msra.mxu0 %v459
    %704 = vmatprep.subr.mxu0 %v463
    %705 = vmatpush1.msra.mxu0 %v462
    %706 = vmatprep.subr.mxu0 %v466
    %707 = vmatpush1.msra.mxu0 %v465
    %708 = vmatprep.subr.mxu0 %v469
    %709 = vmatpush1.msra.mxu0 %v468
    %710 = vmatprep.subr.mxu0 %v472
    %711 = vmatpush1.msra.mxu0 %v471
    %712 = vmatprep.mubr.f32.mxu0 %v641
    %713 = vmatmul.mubr.f32.gmra.mrb[0].mxu0 %v638
    %v714 = vpop.f32.mrb[0].mxu0
    %v715 = vadd.f32 0.0, %v714
    %v716 = vpop.f32.mrb[0].mxu0
    %v717 = vadd.f32 0.0, %v716
    %718 = vdwg.mxu0
    %719 = vmatprep.subr.mxu0 0.0
    %720 = vmatpush1.msra.mxu0 %v380
    %721 = vmatprep.subr.mxu0 0.0
    %722 = vmatpush1.msra.mxu0 %v383
    %723 = vmatprep.subr.mxu0 0.0
    %724 = vmatpush1.msra.mxu0 %v386
    %725 = vmatprep.subr.mxu0 0.0
    %726 = vmatpush1.msra.mxu0 %v389
    %727 = vmatprep.subr.mxu0 0.0
    %728 = vmatpush1.msra.mxu0 %v392
    %729 = vmatprep.subr.mxu0 0.0
    %730 = vmatpush1.msra.mxu0 %v395
    %731 = vmatprep.subr.mxu0 0.0
    %732 = vmatpush1.msra.mxu0 %v398
    %733 = vmatprep.subr.mxu0 0.0
    %734 = vmatpush1.msra.mxu0 %v401
    %735 = vmatprep.subr.mxu0 0.0
    %736 = vmatpush1.msra.mxu0 %v404
    %737 = vmatprep.subr.mxu0 0.0
    %738 = vmatpush1.msra.mxu0 %v407
    %739 = vmatprep.subr.mxu0 0.0
    %740 = vmatpush1.msra.mxu0 %v410
    %741 = vmatprep.subr.mxu0 0.0
    %742 = vmatpush1.msra.mxu0 %v413
    %743 = vmatprep.subr.mxu0 0.0
    %744 = vmatpush1.msra.mxu0 %v416
    %745 = vmatprep.subr.mxu0 0.0
    %746 = vmatpush1.msra.mxu0 %v419
    %747 = vmatprep.subr.mxu0 0.0
    %748 = vmatpush1.msra.mxu0 %v422
    %749 = vmatprep.subr.mxu0 0.0
    %750 = vmatpush1.msra.mxu0 %v425
    %751 = vmatprep.subr.mxu0 0.0
    %752 = vmatpush1.msra.mxu0 %v428
    %753 = vmatprep.subr.mxu0 0.0
    %754 = vmatpush1.msra.mxu0 %v431
    %755 = vmatprep.subr.mxu0 0.0
    %756 = vmatpush1.msra.mxu0 %v434
    %757 = vmatprep.subr.mxu0 0.0
    %758 = vmatpush1.msra.mxu0 %v437
    %759 = vmatprep.subr.mxu0 0.0
    %760 = vmatpush1.msra.mxu0 %v440
    %761 = vmatprep.subr.mxu0 0.0
    %762 = vmatpush1.msra.mxu0 %v443
    %763 = vmatprep.subr.mxu0 0.0
    %764 = vmatpush1.msra.mxu0 %v446
    %765 = vmatprep.subr.mxu0 0.0
    %766 = vmatpush1.msra.mxu0 %v449
    %767 = vmatprep.subr.mxu0 0.0
    %768 = vmatpush1.msra.mxu0 %v452
    %769 = vmatprep.subr.mxu0 0.0
    %770 = vmatpush1.msra.mxu0 %v455
    %771 = vmatprep.subr.mxu0 0.0
    %772 = vmatpush1.msra.mxu0 %v458
    %773 = vmatprep.subr.mxu0 0.0
    %774 = vmatpush1.msra.mxu0 %v461
    %775 = vmatprep.subr.mxu0 0.0
    %776 = vmatpush1.msra.mxu0 %v464
    %777 = vmatprep.subr.mxu0 0.0
    %778 = vmatpush1.msra.mxu0 %v467
    %779 = vmatprep.subr.mxu0 0.0
    %780 = vmatpush1.msra.mxu0 %v470
    %781 = vmatprep.subr.mxu0 0.0
    %782 = vmatpush1.msra.mxu0 %v473
    %783 = vmatprep.mubr.f32.mxu0 %v641
    %784 = vmatmul.mubr.f32.gmra.mrb[0].mxu0 %v638
    %v785 = vpop.f32.mrb[0].mxu0
    %v786 = vadd.f32 0.0, %v785
    %v787 = vpop.f32.mrb[0].mxu0
    %788 = vdwg.mxu0
    %v789 = vadd.f32 %v645, %v715
    %v790 = vadd.f32 %v646, %v717
    %v791 = vadd.f32 %v647, %v786
    %v792 = vxor.u32 %v789, 2147483648
    %v793 = vxor.u32 %v790, 2147483648
    %v794 = vmul.f32 %v792, 1.442695
    %v795 = vpow.pop %v794
    %v796 = vmul.f32 %v793, 1.442695
    %v797 = vpow.pop %v796
    %v798 = vadd.f32 %v795, 1.0
    %v799 = vadd.f32 %v797, 1.0
    %v800 = vrcp.pop %v798
    %v801 = vmul.f32 1.0, %v800
    %v802 = vrcp.pop %v799
    %v803 = vmul.f32 1.0, %v802
    %v804 = vtanh.pop %v791
    %v805 = vmul.f32 %v801, %v641
    %v806 = vmul.f32 %v803, %v804
    %v807 = vsub.f32 %v805, %v806
    %s808 = smul.u32 2, 3
    %s809 = smul.addr %s808, 8
    %s810 = scalar_lea.vmem [#allocation3], %s809
    %v811 = vld [vmem:[%s810] sm:$0xff]
    %v812 = vld [vmem:[%s810 + $0x8] sm:$0xff]
    %v813 = vld [vmem:[%s810 + $0x10] sm:$0xff]
    %814 = vmatprep.subr.mxu0 %v379
    %815 = vmatpush1.msra.mxu0 %v378
    %816 = vmatprep.subr.mxu0 %v382
    %817 = vmatpush1.msra.mxu0 %v381
    %818 = vmatprep.subr.mxu0 %v385
    %819 = vmatpush1.msra.mxu0 %v384
    %820 = vmatprep.subr.mxu0 %v388
    %821 = vmatpush1.msra.mxu0 %v387
    %822 = vmatprep.subr.mxu0 %v391
    %823 = vmatpush1.msra.mxu0 %v390
    %824 = vmatprep.subr.mxu0 %v394
    %825 = vmatpush1.msra.mxu0 %v393
    %826 = vmatprep.subr.mxu0 %v397
    %827 = vmatpush1.msra.mxu0 %v396
    %828 = vmatprep.subr.mxu0 %v400
    %829 = vmatpush1.msra.mxu0 %v399
    %830 = vmatprep.subr.mxu0 %v403
    %831 = vmatpush1.msra.mxu0 %v402
    %832 = vmatprep.subr.mxu0 %v406
    %833 = vmatpush1.msra.mxu0 %v405
    %834 = vmatprep.subr.mxu0 %v409
    %835 = vmatpush1.msra.mxu0 %v408
    %836 = vmatprep.subr.mxu0 %v412
    %837 = vmatpush1.msra.mxu0 %v411
    %838 = vmatprep.subr.mxu0 %v415
    %839 = vmatpush1.msra.mxu0 %v414
    %840 = vmatprep.subr.mxu0 %v418
    %841 = vmatpush1.msra.mxu0 %v417
    %842 = vmatprep.subr.mxu0 %v421
    %843 = vmatpush1.msra.mxu0 %v420
    %844 = vmatprep.subr.mxu0 %v424
    %845 = vmatpush1.msra.mxu0 %v423
    %846 = vmatprep.subr.mxu0 %v427
    %847 = vmatpush1.msra.mxu0 %v426
    %848 = vmatprep.subr.mxu0 %v430
    %849 = vmatpush1.msra.mxu0 %v429
    %850 = vmatprep.subr.mxu0 %v433
    %851 = vmatpush1.msra.mxu0 %v432
    %852 = vmatprep.subr.mxu0 %v436
    %853 = vmatpush1.msra.mxu0 %v435
    %854 = vmatprep.subr.mxu0 %v439
    %855 = vmatpush1.msra.mxu0 %v438
    %856 = vmatprep.subr.mxu0 %v442
    %857 = vmatpush1.msra.mxu0 %v441
    %858 = vmatprep.subr.mxu0 %v445
    %859 = vmatpush1.msra.mxu0 %v444
    %860 = vmatprep.subr.mxu0 %v448
    %861 = vmatpush1.msra.mxu0 %v447
    %862 = vmatprep.subr.mxu0 %v451
    %863 = vmatpush1.msra.mxu0 %v450
    %864 = vmatprep.subr.mxu0 %v454
    %865 = vmatpush1.msra.mxu0 %v453
    %866 = vmatprep.subr.mxu0 %v457
    %867 = vmatpush1.msra.mxu0 %v456
    %868 = vmatprep.subr.mxu0 %v460
    %869 = vmatpush1.msra.mxu0 %v459
    %870 = vmatprep.subr.mxu0 %v463
    %871 = vmatpush1.msra.mxu0 %v462
    %872 = vmatprep.subr.mxu0 %v466
    %873 = vmatpush1.msra.mxu0 %v465
    %874 = vmatprep.subr.mxu0 %v469
    %875 = vmatpush1.msra.mxu0 %v468
    %876 = vmatprep.subr.mxu0 %v472
    %877 = vmatpush1.msra.mxu0 %v471
    %878 = vmatprep.mubr.f32.mxu0 %v807
    %879 = vmatmul.mubr.f32.gmra.mrb[0].mxu0 %v804
    %v880 = vpop.f32.mrb[0].mxu0
    %v881 = vadd.f32 0.0, %v880
    %v882 = vpop.f32.mrb[0].mxu0
    %v883 = vadd.f32 0.0, %v882
    %884 = vdwg.mxu0
    %885 = vmatprep.subr.mxu0 0.0
    %886 = vmatpush1.msra.mxu0 %v380
    %887 = vmatprep.subr.mxu0 0.0
    %888 = vmatpush1.msra.mxu0 %v383
    %889 = vmatprep.subr.mxu0 0.0
    %890 = vmatpush1.msra.mxu0 %v386
    %891 = vmatprep.subr.mxu0 0.0
    %892 = vmatpush1.msra.mxu0 %v389
    %893 = vmatprep.subr.mxu0 0.0
    %894 = vmatpush1.msra.mxu0 %v392
    %895 = vmatprep.subr.mxu0 0.0
    %896 = vmatpush1.msra.mxu0 %v395
    %897 = vmatprep.subr.mxu0 0.0
    %898 = vmatpush1.msra.mxu0 %v398
    %899 = vmatprep.subr.mxu0 0.0
    %900 = vmatpush1.msra.mxu0 %v401
    %901 = vmatprep.subr.mxu0 0.0
    %902 = vmatpush1.msra.mxu0 %v404
    %903 = vmatprep.subr.mxu0 0.0
    %904 = vmatpush1.msra.mxu0 %v407
    %905 = vmatprep.subr.mxu0 0.0
    %906 = vmatpush1.msra.mxu0 %v410
    %907 = vmatprep.subr.mxu0 0.0
    %908 = vmatpush1.msra.mxu0 %v413
    %909 = vmatprep.subr.mxu0 0.0
    %910 = vmatpush1.msra.mxu0 %v416
    %911 = vmatprep.subr.mxu0 0.0
    %912 = vmatpush1.msra.mxu0 %v419
    %913 = vmatprep.subr.mxu0 0.0
    %914 = vmatpush1.msra.mxu0 %v422
    %915 = vmatprep.subr.mxu0 0.0
    %916 = vmatpush1.msra.mxu0 %v425
    %917 = vmatprep.subr.mxu0 0.0
    %918 = vmatpush1.msra.mxu0 %v428
    %919 = vmatprep.subr.mxu0 0.0
    %920 = vmatpush1.msra.mxu0 %v431
    %921 = vmatprep.subr.mxu0 0.0
    %922 = vmatpush1.msra.mxu0 %v434
    %923 = vmatprep.subr.mxu0 0.0
    %924 = vmatpush1.msra.mxu0 %v437
    %925 = vmatprep.subr.mxu0 0.0
    %926 = vmatpush1.msra.mxu0 %v440
    %927 = vmatprep.subr.mxu0 0.0
    %928 = vmatpush1.msra.mxu0 %v443
    %929 = vmatprep.subr.mxu0 0.0
    %930 = vmatpush1.msra.mxu0 %v446
    %931 = vmatprep.subr.mxu0 0.0
    %932 = vmatpush1.msra.mxu0 %v449
    %933 = vmatprep.subr.mxu0 0.0
    %934 = vmatpush1.msra.mxu0 %v452
    %935 = vmatprep.subr.mxu0 0.0
    %936 = vmatpush1.msra.mxu0 %v455
    %937 = vmatprep.subr.mxu0 0.0
    %938 = vmatpush1.msra.mxu0 %v458
    %939 = vmatprep.subr.mxu0 0.0
    %940 = vmatpush1.msra.mxu0 %v461
    %941 = vmatprep.subr.mxu0 0.0
    %942 = vmatpush1.msra.mxu0 %v464
    %943 = vmatprep.subr.mxu0 0.0
    %944 = vmatpush1.msra.mxu0 %v467
    %945 = vmatprep.subr.mxu0 0.0
    %946 = vmatpush1.msra.mxu0 %v470
    %947 = vmatprep.subr.mxu0 0.0
    %948 = vmatpush1.msra.mxu0 %v473
    %949 = vmatprep.mubr.f32.mxu0 %v807
    %950 = vmatmul.mubr.f32.gmra.mrb[0].mxu0 %v804
    %v951 = vpop.f32.mrb[0].mxu0
    %v952 = vadd.f32 0.0, %v951
    %v953 = vpop.f32.mrb[0].mxu0
    %954 = vdwg.mxu0
    %v955 = vadd.f32 %v811, %v881
    %v956 = vadd.f32 %v812, %v883
    %v957 = vadd.f32 %v813, %v952
    %v958 = vxor.u32 %v955, 2147483648
    %v959 = vxor.u32 %v956, 2147483648
    %v960 = vmul.f32 %v958, 1.442695
    %v961 = vpow.pop %v960
    %v962 = vmul.f32 %v959, 1.442695
    %v963 = vpow.pop %v962
    %v964 = vadd.f32 %v961, 1.0
    %v965 = vadd.f32 %v963, 1.0
    %v966 = vrcp.pop %v964
    %v967 = vmul.f32 1.0, %v966
    %v968 = vrcp.pop %v965
    %v969 = vmul.f32 1.0, %v968
    %v970 = vtanh.pop %v957
    %v971 = vmul.f32 %v967, %v807
    %v972 = vmul.f32 %v969, %v970
    %v973 = vsub.f32 %v971, %v972
    %s974 = smul.u32 3, 3
    %s975 = smul.addr %s974, 8
    %s976 = scalar_lea.vmem [#allocation3], %s975
    %v977 = vld [vmem:[%s976] sm:$0xff]
    %v978 = vld [vmem:[%s976 + $0x8] sm:$0xff]
    %v979 = vld [vmem:[%s976 + $0x10] sm:$0xff]
    %980 = vmatprep.subr.mxu0 %v379
    %981 = vmatpush1.msra.mxu0 %v378
    %982 = vmatprep.subr.mxu0 %v382
    %983 = vmatpush1.msra.mxu0 %v381
    %984 = vmatprep.subr.mxu0 %v385
    %985 = vmatpush1.msra.mxu0 %v384
    %986 = vmatprep.subr.mxu0 %v388
    %987 = vmatpush1.msra.mxu0 %v387
    %988 = vmatprep.subr.mxu0 %v391
    %989 = vmatpush1.msra.mxu0 %v390
    %990 = vmatprep.subr.mxu0 %v394
    %991 = vmatpush1.msra.mxu0 %v393
    %992 = vmatprep.subr.mxu0 %v397
    %993 = vmatpush1.msra.mxu0 %v396
    %994 = vmatprep.subr.mxu0 %v400
    %995 = vmatpush1.msra.mxu0 %v399
    %996 = vmatprep.subr.mxu0 %v403
    %997 = vmatpush1.msra.mxu0 %v402
    %998 = vmatprep.subr.mxu0 %v406
    %999 = vmatpush1.msra.mxu0 %v405
    %1000 = vmatprep.subr.mxu0 %v409
    %1001 = vmatpush1.msra.mxu0 %v408
    %1002 = vmatprep.subr.mxu0 %v412
    %1003 = vmatpush1.msra.mxu0 %v411
    %1004 = vmatprep.subr.mxu0 %v415
    %1005 = vmatpush1.msra.mxu0 %v414
    %1006 = vmatprep.subr.mxu0 %v418
    %1007 = vmatpush1.msra.mxu0 %v417
    %1008 = vmatprep.subr.mxu0 %v421
    %1009 = vmatpush1.msra.mxu0 %v420
    %1010 = vmatprep.subr.mxu0 %v424
    %1011 = vmatpush1.msra.mxu0 %v423
    %1012 = vmatprep.subr.mxu0 %v427
    %1013 = vmatpush1.msra.mxu0 %v426
    %1014 = vmatprep.subr.mxu0 %v430
    %1015 = vmatpush1.msra.mxu0 %v429
    %1016 = vmatprep.subr.mxu0 %v433
    %1017 = vmatpush1.msra.mxu0 %v432
    %1018 = vmatprep.subr.mxu0 %v436
    %1019 = vmatpush1.msra.mxu0 %v435
    %1020 = vmatprep.subr.mxu0 %v439
    %1021 = vmatpush1.msra.mxu0 %v438
    %1022 = vmatprep.subr.mxu0 %v442
    %1023 = vmatpush1.msra.mxu0 %v441
    %1024 = vmatprep.subr.mxu0 %v445
    %1025 = vmatpush1.msra.mxu0 %v444
    %1026 = vmatprep.subr.mxu0 %v448
    %1027 = vmatpush1.msra.mxu0 %v447
    %1028 = vmatprep.subr.mxu0 %v451
    %1029 = vmatpush1.msra.mxu0 %v450
    %1030 = vmatprep.subr.mxu0 %v454
    %1031 = vmatpush1.msra.mxu0 %v453
    %1032 = vmatprep.subr.mxu0 %v457
    %1033 = vmatpush1.msra.mxu0 %v456
    %1034 = vmatprep.subr.mxu0 %v460
    %1035 = vmatpush1.msra.mxu0 %v459
    %1036 = vmatprep.subr.mxu0 %v463
    %1037 = vmatpush1.msra.mxu0 %v462
    %1038 = vmatprep.subr.mxu0 %v466
    %1039 = vmatpush1.msra.mxu0 %v465
    %1040 = vmatprep.subr.mxu0 %v469
    %1041 = vmatpush1.msra.mxu0 %v468
    %1042 = vmatprep.subr.mxu0 %v472
    %1043 = vmatpush1.msra.mxu0 %v471
    %1044 = vmatprep.mubr.f32.mxu0 %v973
    %1045 = vmatmul.mubr.f32.gmra.mrb[0].mxu0 %v970
    %v1046 = vpop.f32.mrb[0].mxu0
    %v1047 = vadd.f32 0.0, %v1046
    %v1048 = vpop.f32.mrb[0].mxu0
    %v1049 = vadd.f32 0.0, %v1048
    %1050 = vdwg.mxu0
    %1051 = vmatprep.subr.mxu0 0.0
    %1052 = vmatpush1.msra.mxu0 %v380
    %1053 = vmatprep.subr.mxu0 0.0
    %1054 = vmatpush1.msra.mxu0 %v383
    %1055 = vmatprep.subr.mxu0 0.0
    %1056 = vmatpush1.msra.mxu0 %v386
    %1057 = vmatprep.subr.mxu0 0.0
    %1058 = vmatpush1.msra.mxu0 %v389
    %1059 = vmatprep.subr.mxu0 0.0
    %1060 = vmatpush1.msra.mxu0 %v392
    %1061 = vmatprep.subr.mxu0 0.0
    %1062 = vmatpush1.msra.mxu0 %v395
    %1063 = vmatprep.subr.mxu0 0.0
    %1064 = vmatpush1.msra.mxu0 %v398
    %1065 = vmatprep.subr.mxu0 0.0
    %1066 = vmatpush1.msra.mxu0 %v401
    %1067 = vmatprep.subr.mxu0 0.0
    %1068 = vmatpush1.msra.mxu0 %v404
    %1069 = vmatprep.subr.mxu0 0.0
    %1070 = vmatpush1.msra.mxu0 %v407
    %1071 = vmatprep.subr.mxu0 0.0
    %1072 = vmatpush1.msra.mxu0 %v410
    %1073 = vmatprep.subr.mxu0 0.0
    %1074 = vmatpush1.msra.mxu0 %v413
    %1075 = vmatprep.subr.mxu0 0.0
    %1076 = vmatpush1.msra.mxu0 %v416
    %1077 = vmatprep.subr.mxu0 0.0
    %1078 = vmatpush1.msra.mxu0 %v419
    %1079 = vmatprep.subr.mxu0 0.0
    %1080 = vmatpush1.msra.mxu0 %v422
    %1081 = vmatprep.subr.mxu0 0.0
    %1082 = vmatpush1.msra.mxu0 %v425
    %1083 = vmatprep.subr.mxu0 0.0
    %1084 = vmatpush1.msra.mxu0 %v428
    %1085 = vmatprep.subr.mxu0 0.0
    %1086 = vmatpush1.msra.mxu0 %v431
    %1087 = vmatprep.subr.mxu0 0.0
    %1088 = vmatpush1.msra.mxu0 %v434
    %1089 = vmatprep.subr.mxu0 0.0
    %1090 = vmatpush1.msra.mxu0 %v437
    %1091 = vmatprep.subr.mxu0 0.0
    %1092 = vmatpush1.msra.mxu0 %v440
    %1093 = vmatprep.subr.mxu0 0.0
    %1094 = vmatpush1.msra.mxu0 %v443
    %1095 = vmatprep.subr.mxu0 0.0
    %1096 = vmatpush1.msra.mxu0 %v446
    %1097 = vmatprep.subr.mxu0 0.0
    %1098 = vmatpush1.msra.mxu0 %v449
    %1099 = vmatprep.subr.mxu0 0.0
    %1100 = vmatpush1.msra.mxu0 %v452
    %1101 = vmatprep.subr.mxu0 0.0
    %1102 = vmatpush1.msra.mxu0 %v455
    %1103 = vmatprep.subr.mxu0 0.0
    %1104 = vmatpush1.msra.mxu0 %v458
    %1105 = vmatprep.subr.mxu0 0.0
    %1106 = vmatpush1.msra.mxu0 %v461
    %1107 = vmatprep.subr.mxu0 0.0
    %1108 = vmatpush1.msra.mxu0 %v464
    %1109 = vmatprep.subr.mxu0 0.0
    %1110 = vmatpush1.msra.mxu0 %v467
    %1111 = vmatprep.subr.mxu0 0.0
    %1112 = vmatpush1.msra.mxu0 %v470
    %1113 = vmatprep.subr.mxu0 0.0
    %1114 = vmatpush1.msra.mxu0 %v473
    %1115 = vmatprep.mubr.f32.mxu0 %v973
    %1116 = vmatmul.mubr.f32.gmra.mrb[0].mxu0 %v970
    %v1117 = vpop.f32.mrb[0].mxu0
    %v1118 = vadd.f32 0.0, %v1117
    %v1119 = vpop.f32.mrb[0].mxu0
    %1120 = vdwg.mxu0
    %v1121 = vadd.f32 %v977, %v1047
    %v1122 = vadd.f32 %v978, %v1049
    %v1123 = vadd.f32 %v979, %v1118
    %v1124 = vxor.u32 %v1121, 2147483648
    %v1125 = vxor.u32 %v1122, 2147483648
    %v1126 = vmul.f32 %v1124, 1.442695
    %v1127 = vpow.pop %v1126
    %v1128 = vmul.f32 %v1125, 1.442695
    %v1129 = vpow.pop %v1128
    %v1130 = vadd.f32 %v1127, 1.0
    %v1131 = vadd.f32 %v1129, 1.0
    %v1132 = vrcp.pop %v1130
    %v1133 = vmul.f32 1.0, %v1132
    %v1134 = vrcp.pop %v1131
    %v1135 = vmul.f32 1.0, %v1134
    %v1136 = vtanh.pop %v1123
    %v1137 = vmul.f32 %v1133, %v973
    %v1138 = vmul.f32 %v1135, %v1136
    %v1139 = vsub.f32 %v1137, %v1138
    %s1140 = smul.u32 4, 3
    %s1141 = smul.addr %s1140, 8
    %s1142 = scalar_lea.vmem [#allocation3], %s1141
    %v1143 = vld [vmem:[%s1142] sm:$0xff]
    %v1144 = vld [vmem:[%s1142 + $0x8] sm:$0xff]
    %v1145 = vld [vmem:[%s1142 + $0x10] sm:$0xff]
    %1146 = vmatprep.subr.mxu0 %v379
    %1147 = vmatpush1.msra.mxu0 %v378
    %1148 = vmatprep.subr.mxu0 %v382
    %1149 = vmatpush1.msra.mxu0 %v381
    %1150 = vmatprep.subr.mxu0 %v385
    %1151 = vmatpush1.msra.mxu0 %v384
    %1152 = vmatprep.subr.mxu0 %v388
    %1153 = vmatpush1.msra.mxu0 %v387
    %1154 = vmatprep.subr.mxu0 %v391
    %1155 = vmatpush1.msra.mxu0 %v390
    %1156 = vmatprep.subr.mxu0 %v394
    %1157 = vmatpush1.msra.mxu0 %v393
    %1158 = vmatprep.subr.mxu0 %v397
    %1159 = vmatpush1.msra.mxu0 %v396
    %1160 = vmatprep.subr.mxu0 %v400
    %1161 = vmatpush1.msra.mxu0 %v399
    %1162 = vmatprep.subr.mxu0 %v403
    %1163 = vmatpush1.msra.mxu0 %v402
    %1164 = vmatprep.subr.mxu0 %v406
    %1165 = vmatpush1.msra.mxu0 %v405
    %1166 = vmatprep.subr.mxu0 %v409
    %1167 = vmatpush1.msra.mxu0 %v408
    %1168 = vmatprep.subr.mxu0 %v412
    %1169 = vmatpush1.msra.mxu0 %v411
    %1170 = vmatprep.subr.mxu0 %v415
    %1171 = vmatpush1.msra.mxu0 %v414
    %1172 = vmatprep.subr.mxu0 %v418
    %1173 = vmatpush1.msra.mxu0 %v417
    %1174 = vmatprep.subr.mxu0 %v421
    %1175 = vmatpush1.msra.mxu0 %v420
    %1176 = vmatprep.subr.mxu0 %v424
    %1177 = vmatpush1.msra.mxu0 %v423
    %1178 = vmatprep.subr.mxu0 %v427
    %1179 = vmatpush1.msra.mxu0 %v426
    %1180 = vmatprep.subr.mxu0 %v430
    %1181 = vmatpush1.msra.mxu0 %v429
    %1182 = vmatprep.subr.mxu0 %v433
    %1183 = vmatpush1.msra.mxu0 %v432
    %1184 = vmatprep.subr.mxu0 %v436
    %1185 = vmatpush1.msra.mxu0 %v435
    %1186 = vmatprep.subr.mxu0 %v439
    %1187 = vmatpush1.msra.mxu0 %v438
    %1188 = vmatprep.subr.mxu0 %v442
    %1189 = vmatpush1.msra.mxu0 %v441
    %1190 = vmatprep.subr.mxu0 %v445
    %1191 = vmatpush1.msra.mxu0 %v444
    %1192 = vmatprep.subr.mxu0 %v448
    %1193 = vmatpush1.msra.mxu0 %v447
    %1194 = vmatprep.subr.mxu0 %v451
    %1195 = vmatpush1.msra.mxu0 %v450
    %1196 = vmatprep.subr.mxu0 %v454
    %1197 = vmatpush1.msra.mxu0 %v453
    %1198 = vmatprep.subr.mxu0 %v457
    %1199 = vmatpush1.msra.mxu0 %v456
    %1200 = vmatprep.subr.mxu0 %v460
    %1201 = vmatpush1.msra.mxu0 %v459
    %1202 = vmatprep.subr.mxu0 %v463
    %1203 = vmatpush1.msra.mxu0 %v462
    %1204 = vmatprep.subr.mxu0 %v466
    %1205 = vmatpush1.msra.mxu0 %v465
    %1206 = vmatprep.subr.mxu0 %v469
    %1207 = vmatpush1.msra.mxu0 %v468
    %1208 = vmatprep.subr.mxu0 %v472
    %1209 = vmatpush1.msra.mxu0 %v471
    %1210 = vmatprep.mubr.f32.mxu0 %v1139
    %1211 = vmatmul.mubr.f32.gmra.mrb[0].mxu0 %v1136
    %v1212 = vpop.f32.mrb[0].mxu0
    %v1213 = vadd.f32 0.0, %v1212
    %v1214 = vpop.f32.mrb[0].mxu0
    %v1215 = vadd.f32 0.0, %v1214
    %1216 = vdwg.mxu0
    %1217 = vmatprep.subr.mxu0 0.0
    %1218 = vmatpush1.msra.mxu0 %v380
    %1219 = vmatprep.subr.mxu0 0.0
    %1220 = vmatpush1.msra.mxu0 %v383
    %1221 = vmatprep.subr.mxu0 0.0
    %1222 = vmatpush1.msra.mxu0 %v386
    %1223 = vmatprep.subr.mxu0 0.0
    %1224 = vmatpush1.msra.mxu0 %v389
    %1225 = vmatprep.subr.mxu0 0.0
    %1226 = vmatpush1.msra.mxu0 %v392
    %1227 = vmatprep.subr.mxu0 0.0
    %1228 = vmatpush1.msra.mxu0 %v395
    %1229 = vmatprep.subr.mxu0 0.0
    %1230 = vmatpush1.msra.mxu0 %v398
    %1231 = vmatprep.subr.mxu0 0.0
    %1232 = vmatpush1.msra.mxu0 %v401
    %1233 = vmatprep.subr.mxu0 0.0
    %1234 = vmatpush1.msra.mxu0 %v404
    %1235 = vmatprep.subr.mxu0 0.0
    %1236 = vmatpush1.msra.mxu0 %v407
    %1237 = vmatprep.subr.mxu0 0.0
    %1238 = vmatpush1.msra.mxu0 %v410
    %1239 = vmatprep.subr.mxu0 0.0
    %1240 = vmatpush1.msra.mxu0 %v413
    %1241 = vmatprep.subr.mxu0 0.0
    %1242 = vmatpush1.msra.mxu0 %v416
    %1243 = vmatprep.subr.mxu0 0.0
    %1244 = vmatpush1.msra.mxu0 %v419
    %1245 = vmatprep.subr.mxu0 0.0
    %1246 = vmatpush1.msra.mxu0 %v422
    %1247 = vmatprep.subr.mxu0 0.0
    %1248 = vmatpush1.msra.mxu0 %v425
    %1249 = vmatprep.subr.mxu0 0.0
    %1250 = vmatpush1.msra.mxu0 %v428
    %1251 = vmatprep.subr.mxu0 0.0
    %1252 = vmatpush1.msra.mxu0 %v431
    %1253 = vmatprep.subr.mxu0 0.0
    %1254 = vmatpush1.msra.mxu0 %v434
    %1255 = vmatprep.subr.mxu0 0.0
    %1256 = vmatpush1.msra.mxu0 %v437
    %1257 = vmatprep.subr.mxu0 0.0
    %1258 = vmatpush1.msra.mxu0 %v440
    %1259 = vmatprep.subr.mxu0 0.0
    %1260 = vmatpush1.msra.mxu0 %v443
    %1261 = vmatprep.subr.mxu0 0.0
    %1262 = vmatpush1.msra.mxu0 %v446
    %1263 = vmatprep.subr.mxu0 0.0
    %1264 = vmatpush1.msra.mxu0 %v449
    %1265 = vmatprep.subr.mxu0 0.0
    %1266 = vmatpush1.msra.mxu0 %v452
    %1267 = vmatprep.subr.mxu0 0.0
    %1268 = vmatpush1.msra.mxu0 %v455
    %1269 = vmatprep.subr.mxu0 0.0
    %1270 = vmatpush1.msra.mxu0 %v458
    %1271 = vmatprep.subr.mxu0 0.0
    %1272 = vmatpush1.msra.mxu0 %v461
    %1273 = vmatprep.subr.mxu0 0.0
    %1274 = vmatpush1.msra.mxu0 %v464
    %1275 = vmatprep.subr.mxu0 0.0
    %1276 = vmatpush1.msra.mxu0 %v467
    %1277 = vmatprep.subr.mxu0 0.0
    %1278 = vmatpush1.msra.mxu0 %v470
    %1279 = vmatprep.subr.mxu0 0.0
    %1280 = vmatpush1.msra.mxu0 %v473
    %1281 = vmatprep.mubr.f32.mxu0 %v1139
    %1282 = vmatmul.mubr.f32.gmra.mrb[0].mxu0 %v1136
    %v1283 = vpop.f32.mrb[0].mxu0
    %v1284 = vadd.f32 0.0, %v1283
    %v1285 = vpop.f32.mrb[0].mxu0
    %1286 = vdwg.mxu0
    %v1287 = vadd.f32 %v1143, %v1213
    %v1288 = vadd.f32 %v1144, %v1215
    %v1289 = vadd.f32 %v1145, %v1284
    %v1290 = vxor.u32 %v1287, 2147483648
    %v1291 = vxor.u32 %v1288, 2147483648
    %v1292 = vmul.f32 %v1290, 1.442695
    %v1293 = vpow.pop %v1292
    %v1294 = vmul.f32 %v1291, 1.442695
    %v1295 = vpow.pop %v1294
    %v1296 = vadd.f32 %v1293, 1.0
    %v1297 = vadd.f32 %v1295, 1.0
    %v1298 = vrcp.pop %v1296
    %v1299 = vmul.f32 1.0, %v1298
    %v1300 = vrcp.pop %v1297
    %v1301 = vmul.f32 1.0, %v1300
    %v1302 = vtanh.pop %v1289
    %v1303 = vmul.f32 %v1299, %v1139
    %v1304 = vmul.f32 %v1301, %v1302
    %v1305 = vsub.f32 %v1303, %v1304
    %s1306 = smul.u32 5, 3
    %s1307 = smul.addr %s1306, 8
    %s1308 = scalar_lea.vmem [#allocation3], %s1307
    %v1309 = vld [vmem:[%s1308] sm:$0xff]
    %v1310 = vld [vmem:[%s1308 + $0x8] sm:$0xff]
    %v1311 = vld [vmem:[%s1308 + $0x10] sm:$0xff]
    %1312 = vmatprep.subr.mxu0 %v379
    %1313 = vmatpush1.msra.mxu0 %v378
    %1314 = vmatprep.subr.mxu0 %v382
    %1315 = vmatpush1.msra.mxu0 %v381
    %1316 = vmatprep.subr.mxu0 %v385
    %1317 = vmatpush1.msra.mxu0 %v384
    %1318 = vmatprep.subr.mxu0 %v388
    %1319 = vmatpush1.msra.mxu0 %v387
    %1320 = vmatprep.subr.mxu0 %v391
    %1321 = vmatpush1.msra.mxu0 %v390
    %1322 = vmatprep.subr.mxu0 %v394
    %1323 = vmatpush1.msra.mxu0 %v393
    %1324 = vmatprep.subr.mxu0 %v397
    %1325 = vmatpush1.msra.mxu0 %v396
    %1326 = vmatprep.subr.mxu0 %v400
    %1327 = vmatpush1.msra.mxu0 %v399
    %1328 = vmatprep.subr.mxu0 %v403
    %1329 = vmatpush1.msra.mxu0 %v402
    %1330 = vmatprep.subr.mxu0 %v406
    %1331 = vmatpush1.msra.mxu0 %v405
    %1332 = vmatprep.subr.mxu0 %v409
    %1333 = vmatpush1.msra.mxu0 %v408
    %1334 = vmatprep.subr.mxu0 %v412
    %1335 = vmatpush1.msra.mxu0 %v411
    %1336 = vmatprep.subr.mxu0 %v415
    %1337 = vmatpush1.msra.mxu0 %v414
    %1338 = vmatprep.subr.mxu0 %v418
    %1339 = vmatpush1.msra.mxu0 %v417
    %1340 = vmatprep.subr.mxu0 %v421
    %1341 = vmatpush1.msra.mxu0 %v420
    %1342 = vmatprep.subr.mxu0 %v424
    %1343 = vmatpush1.msra.mxu0 %v423
    %1344 = vmatprep.subr.mxu0 %v427
    %1345 = vmatpush1.msra.mxu0 %v426
    %1346 = vmatprep.subr.mxu0 %v430
    %1347 = vmatpush1.msra.mxu0 %v429
    %1348 = vmatprep.subr.mxu0 %v433
    %1349 = vmatpush1.msra.mxu0 %v432
    %1350 = vmatprep.subr.mxu0 %v436
    %1351 = vmatpush1.msra.mxu0 %v435
    %1352 = vmatprep.subr.mxu0 %v439
    %1353 = vmatpush1.msra.mxu0 %v438
    %1354 = vmatprep.subr.mxu0 %v442
    %1355 = vmatpush1.msra.mxu0 %v441
    %1356 = vmatprep.subr.mxu0 %v445
    %1357 = vmatpush1.msra.mxu0 %v444
    %1358 = vmatprep.subr.mxu0 %v448
    %1359 = vmatpush1.msra.mxu0 %v447
    %1360 = vmatprep.subr.mxu0 %v451
    %1361 = vmatpush1.msra.mxu0 %v450
    %1362 = vmatprep.subr.mxu0 %v454
    %1363 = vmatpush1.msra.mxu0 %v453
    %1364 = vmatprep.subr.mxu0 %v457
    %1365 = vmatpush1.msra.mxu0 %v456
    %1366 = vmatprep.subr.mxu0 %v460
    %1367 = vmatpush1.msra.mxu0 %v459
    %1368 = vmatprep.subr.mxu0 %v463
    %1369 = vmatpush1.msra.mxu0 %v462
    %1370 = vmatprep.subr.mxu0 %v466
    %1371 = vmatpush1.msra.mxu0 %v465
    %1372 = vmatprep.subr.mxu0 %v469
    %1373 = vmatpush1.msra.mxu0 %v468
    %1374 = vmatprep.subr.mxu0 %v472
    %1375 = vmatpush1.msra.mxu0 %v471
    %1376 = vmatprep.mubr.f32.mxu0 %v1305
    %1377 = vmatmul.mubr.f32.gmra.mrb[0].mxu0 %v1302
    %v1378 = vpop.f32.mrb[0].mxu0
    %v1379 = vadd.f32 0.0, %v1378
    %v1380 = vpop.f32.mrb[0].mxu0
    %v1381 = vadd.f32 0.0, %v1380
    %1382 = vdwg.mxu0
    %1383 = vmatprep.subr.mxu0 0.0
    %1384 = vmatpush1.msra.mxu0 %v380
    %1385 = vmatprep.subr.mxu0 0.0
    %1386 = vmatpush1.msra.mxu0 %v383
    %1387 = vmatprep.subr.mxu0 0.0
    %1388 = vmatpush1.msra.mxu0 %v386
    %1389 = vmatprep.subr.mxu0 0.0
    %1390 = vmatpush1.msra.mxu0 %v389
    %1391 = vmatprep.subr.mxu0 0.0
    %1392 = vmatpush1.msra.mxu0 %v392
    %1393 = vmatprep.subr.mxu0 0.0
    %1394 = vmatpush1.msra.mxu0 %v395
    %1395 = vmatprep.subr.mxu0 0.0
    %1396 = vmatpush1.msra.mxu0 %v398
    %1397 = vmatprep.subr.mxu0 0.0
    %1398 = vmatpush1.msra.mxu0 %v401
    %1399 = vmatprep.subr.mxu0 0.0
    %1400 = vmatpush1.msra.mxu0 %v404
    %1401 = vmatprep.subr.mxu0 0.0
    %1402 = vmatpush1.msra.mxu0 %v407
    %1403 = vmatprep.subr.mxu0 0.0
    %1404 = vmatpush1.msra.mxu0 %v410
    %1405 = vmatprep.subr.mxu0 0.0
    %1406 = vmatpush1.msra.mxu0 %v413
    %1407 = vmatprep.subr.mxu0 0.0
    %1408 = vmatpush1.msra.mxu0 %v416
    %1409 = vmatprep.subr.mxu0 0.0
    %1410 = vmatpush1.msra.mxu0 %v419
    %1411 = vmatprep.subr.mxu0 0.0
    %1412 = vmatpush1.msra.mxu0 %v422
    %1413 = vmatprep.subr.mxu0 0.0
    %1414 = vmatpush1.msra.mxu0 %v425
    %1415 = vmatprep.subr.mxu0 0.0
    %1416 = vmatpush1.msra.mxu0 %v428
    %1417 = vmatprep.subr.mxu0 0.0
    %1418 = vmatpush1.msra.mxu0 %v431
    %1419 = vmatprep.subr.mxu0 0.0
    %1420 = vmatpush1.msra.mxu0 %v434
    %1421 = vmatprep.subr.mxu0 0.0
    %1422 = vmatpush1.msra.mxu0 %v437
    %1423 = vmatprep.subr.mxu0 0.0
    %1424 = vmatpush1.msra.mxu0 %v440
    %1425 = vmatprep.subr.mxu0 0.0
    %1426 = vmatpush1.msra.mxu0 %v443
    %1427 = vmatprep.subr.mxu0 0.0
    %1428 = vmatpush1.msra.mxu0 %v446
    %1429 = vmatprep.subr.mxu0 0.0
    %1430 = vmatpush1.msra.mxu0 %v449
    %1431 = vmatprep.subr.mxu0 0.0
    %1432 = vmatpush1.msra.mxu0 %v452
    %1433 = vmatprep.subr.mxu0 0.0
    %1434 = vmatpush1.msra.mxu0 %v455
    %1435 = vmatprep.subr.mxu0 0.0
    %1436 = vmatpush1.msra.mxu0 %v458
    %1437 = vmatprep.subr.mxu0 0.0
    %1438 = vmatpush1.msra.mxu0 %v461
    %1439 = vmatprep.subr.mxu0 0.0
    %1440 = vmatpush1.msra.mxu0 %v464
    %1441 = vmatprep.subr.mxu0 0.0
    %1442 = vmatpush1.msra.mxu0 %v467
    %1443 = vmatprep.subr.mxu0 0.0
    %1444 = vmatpush1.msra.mxu0 %v470
    %1445 = vmatprep.subr.mxu0 0.0
    %1446 = vmatpush1.msra.mxu0 %v473
    %1447 = vmatprep.mubr.f32.mxu0 %v1305
    %1448 = vmatmul.mubr.f32.gmra.mrb[0].mxu0 %v1302
    %v1449 = vpop.f32.mrb[0].mxu0
    %v1450 = vadd.f32 0.0, %v1449
    %v1451 = vpop.f32.mrb[0].mxu0
    %1452 = vdwg.mxu0
    %v1453 = vadd.f32 %v1309, %v1379
    %v1454 = vadd.f32 %v1310, %v1381
    %v1455 = vadd.f32 %v1311, %v1450
    %v1456 = vxor.u32 %v1453, 2147483648
    %v1457 = vxor.u32 %v1454, 2147483648
    %v1458 = vmul.f32 %v1456, 1.442695
    %v1459 = vpow.pop %v1458
    %v1460 = vmul.f32 %v1457, 1.442695
    %v1461 = vpow.pop %v1460
    %v1462 = vadd.f32 %v1459, 1.0
    %v1463 = vadd.f32 %v1461, 1.0
    %v1464 = vrcp.pop %v1462
    %v1465 = vmul.f32 1.0, %v1464
    %v1466 = vrcp.pop %v1463
    %v1467 = vmul.f32 1.0, %v1466
    %v1468 = vtanh.pop %v1455
    %v1469 = vmul.f32 %v1465, %v1305
    %v1470 = vmul.f32 %v1467, %v1468
    %v1471 = vsub.f32 %v1469, %v1470
    %s1472 = smul.u32 6, 3
    %s1473 = smul.addr %s1472, 8
    %s1474 = scalar_lea.vmem [#allocation3], %s1473
    %v1475 = vld [vmem:[%s1474] sm:$0xff]
    %v1476 = vld [vmem:[%s1474 + $0x8] sm:$0xff]
    %v1477 = vld [vmem:[%s1474 + $0x10] sm:$0xff]
    %1478 = vmatprep.subr.mxu0 %v379
    %1479 = vmatpush1.msra.mxu0 %v378
    %1480 = vmatprep.subr.mxu0 %v382
    %1481 = vmatpush1.msra.mxu0 %v381
    %1482 = vmatprep.subr.mxu0 %v385
    %1483 = vmatpush1.msra.mxu0 %v384
    %1484 = vmatprep.subr.mxu0 %v388
    %1485 = vmatpush1.msra.mxu0 %v387
    %1486 = vmatprep.subr.mxu0 %v391
    %1487 = vmatpush1.msra.mxu0 %v390
    %1488 = vmatprep.subr.mxu0 %v394
    %1489 = vmatpush1.msra.mxu0 %v393
    %1490 = vmatprep.subr.mxu0 %v397
    %1491 = vmatpush1.msra.mxu0 %v396
    %1492 = vmatprep.subr.mxu0 %v400
    %1493 = vmatpush1.msra.mxu0 %v399
    %1494 = vmatprep.subr.mxu0 %v403
    %1495 = vmatpush1.msra.mxu0 %v402
    %1496 = vmatprep.subr.mxu0 %v406
    %1497 = vmatpush1.msra.mxu0 %v405
    %1498 = vmatprep.subr.mxu0 %v409
    %1499 = vmatpush1.msra.mxu0 %v408
    %1500 = vmatprep.subr.mxu0 %v412
    %1501 = vmatpush1.msra.mxu0 %v411
    %1502 = vmatprep.subr.mxu0 %v415
    %1503 = vmatpush1.msra.mxu0 %v414
    %1504 = vmatprep.subr.mxu0 %v418
    %1505 = vmatpush1.msra.mxu0 %v417
    %1506 = vmatprep.subr.mxu0 %v421
    %1507 = vmatpush1.msra.mxu0 %v420
    %1508 = vmatprep.subr.mxu0 %v424
    %1509 = vmatpush1.msra.mxu0 %v423
    %1510 = vmatprep.subr.mxu0 %v427
    %1511 = vmatpush1.msra.mxu0 %v426
    %1512 = vmatprep.subr.mxu0 %v430
    %1513 = vmatpush1.msra.mxu0 %v429
    %1514 = vmatprep.subr.mxu0 %v433
    %1515 = vmatpush1.msra.mxu0 %v432
    %1516 = vmatprep.subr.mxu0 %v436
    %1517 = vmatpush1.msra.mxu0 %v435
    %1518 = vmatprep.subr.mxu0 %v439
    %1519 = vmatpush1.msra.mxu0 %v438
    %1520 = vmatprep.subr.mxu0 %v442
    %1521 = vmatpush1.msra.mxu0 %v441
    %1522 = vmatprep.subr.mxu0 %v445
    %1523 = vmatpush1.msra.mxu0 %v444
    %1524 = vmatprep.subr.mxu0 %v448
    %1525 = vmatpush1.msra.mxu0 %v447
    %1526 = vmatprep.subr.mxu0 %v451
    %1527 = vmatpush1.msra.mxu0 %v450
    %1528 = vmatprep.subr.mxu0 %v454
    %1529 = vmatpush1.msra.mxu0 %v453
    %1530 = vmatprep.subr.mxu0 %v457
    %1531 = vmatpush1.msra.mxu0 %v456
    %1532 = vmatprep.subr.mxu0 %v460
    %1533 = vmatpush1.msra.mxu0 %v459
    %1534 = vmatprep.subr.mxu0 %v463
    %1535 = vmatpush1.msra.mxu0 %v462
    %1536 = vmatprep.subr.mxu0 %v466
    %1537 = vmatpush1.msra.mxu0 %v465
    %1538 = vmatprep.subr.mxu0 %v469
    %1539 = vmatpush1.msra.mxu0 %v468
    %1540 = vmatprep.subr.mxu0 %v472
    %1541 = vmatpush1.msra.mxu0 %v471
    %1542 = vmatprep.mubr.f32.mxu0 %v1471
    %1543 = vmatmul.mubr.f32.gmra.mrb[0].mxu0 %v1468
    %v1544 = vpop.f32.mrb[0].mxu0
    %v1545 = vadd.f32 0.0, %v1544
    %v1546 = vpop.f32.mrb[0].mxu0
    %v1547 = vadd.f32 0.0, %v1546
    %1548 = vdwg.mxu0
    %1549 = vmatprep.subr.mxu0 0.0
    %1550 = vmatpush1.msra.mxu0 %v380
    %1551 = vmatprep.subr.mxu0 0.0
    %1552 = vmatpush1.msra.mxu0 %v383
    %1553 = vmatprep.subr.mxu0 0.0
    %1554 = vmatpush1.msra.mxu0 %v386
    %1555 = vmatprep.subr.mxu0 0.0
    %1556 = vmatpush1.msra.mxu0 %v389
    %1557 = vmatprep.subr.mxu0 0.0
    %1558 = vmatpush1.msra.mxu0 %v392
    %1559 = vmatprep.subr.mxu0 0.0
    %1560 = vmatpush1.msra.mxu0 %v395
    %1561 = vmatprep.subr.mxu0 0.0
    %1562 = vmatpush1.msra.mxu0 %v398
    %1563 = vmatprep.subr.mxu0 0.0
    %1564 = vmatpush1.msra.mxu0 %v401
    %1565 = vmatprep.subr.mxu0 0.0
    %1566 = vmatpush1.msra.mxu0 %v404
    %1567 = vmatprep.subr.mxu0 0.0
    %1568 = vmatpush1.msra.mxu0 %v407
    %1569 = vmatprep.subr.mxu0 0.0
    %1570 = vmatpush1.msra.mxu0 %v410
    %1571 = vmatprep.subr.mxu0 0.0
    %1572 = vmatpush1.msra.mxu0 %v413
    %1573 = vmatprep.subr.mxu0 0.0
    %1574 = vmatpush1.msra.mxu0 %v416
    %1575 = vmatprep.subr.mxu0 0.0
    %1576 = vmatpush1.msra.mxu0 %v419
    %1577 = vmatprep.subr.mxu0 0.0
    %1578 = vmatpush1.msra.mxu0 %v422
    %1579 = vmatprep.subr.mxu0 0.0
    %1580 = vmatpush1.msra.mxu0 %v425
    %1581 = vmatprep.subr.mxu0 0.0
    %1582 = vmatpush1.msra.mxu0 %v428
    %1583 = vmatprep.subr.mxu0 0.0
    %1584 = vmatpush1.msra.mxu0 %v431
    %1585 = vmatprep.subr.mxu0 0.0
    %1586 = vmatpush1.msra.mxu0 %v434
    %1587 = vmatprep.subr.mxu0 0.0
    %1588 = vmatpush1.msra.mxu0 %v437
    %1589 = vmatprep.subr.mxu0 0.0
    %1590 = vmatpush1.msra.mxu0 %v440
    %1591 = vmatprep.subr.mxu0 0.0
    %1592 = vmatpush1.msra.mxu0 %v443
    %1593 = vmatprep.subr.mxu0 0.0
    %1594 = vmatpush1.msra.mxu0 %v446
    %1595 = vmatprep.subr.mxu0 0.0
    %1596 = vmatpush1.msra.mxu0 %v449
    %1597 = vmatprep.subr.mxu0 0.0
    %1598 = vmatpush1.msra.mxu0 %v452
    %1599 = vmatprep.subr.mxu0 0.0
    %1600 = vmatpush1.msra.mxu0 %v455
    %1601 = vmatprep.subr.mxu0 0.0
    %1602 = vmatpush1.msra.mxu0 %v458
    %1603 = vmatprep.subr.mxu0 0.0
    %1604 = vmatpush1.msra.mxu0 %v461
    %1605 = vmatprep.subr.mxu0 0.0
    %1606 = vmatpush1.msra.mxu0 %v464
    %1607 = vmatprep.subr.mxu0 0.0
    %1608 = vmatpush1.msra.mxu0 %v467
    %1609 = vmatprep.subr.mxu0 0.0
    %1610 = vmatpush1.msra.mxu0 %v470
    %1611 = vmatprep.subr.mxu0 0.0
    %1612 = vmatpush1.msra.mxu0 %v473
    %1613 = vmatprep.mubr.f32.mxu0 %v1471
    %1614 = vmatmul.mubr.f32.gmra.mrb[0].mxu0 %v1468
    %v1615 = vpop.f32.mrb[0].mxu0
    %v1616 = vadd.f32 0.0, %v1615
    %v1617 = vpop.f32.mrb[0].mxu0
    %1618 = vdwg.mxu0
    %v1619 = vadd.f32 %v1475, %v1545
    %v1620 = vadd.f32 %v1476, %v1547
    %v1621 = vadd.f32 %v1477, %v1616
    %v1622 = vxor.u32 %v1619, 2147483648
    %v1623 = vxor.u32 %v1620, 2147483648
    %v1624 = vmul.f32 %v1622, 1.442695
    %v1625 = vpow.pop %v1624
    %v1626 = vmul.f32 %v1623, 1.442695
    %v1627 = vpow.pop %v1626
    %v1628 = vadd.f32 %v1625, 1.0
    %v1629 = vadd.f32 %v1627, 1.0
    %v1630 = vrcp.pop %v1628
    %v1631 = vmul.f32 1.0, %v1630
    %v1632 = vrcp.pop %v1629
    %v1633 = vmul.f32 1.0, %v1632
    %v1634 = vtanh.pop %v1621
    %v1635 = vmul.f32 %v1631, %v1471
    %v1636 = vmul.f32 %v1633, %v1634
    %v1637 = vsub.f32 %v1635, %v1636
    %s1638 = smul.u32 7, 3
    %s1639 = smul.addr %s1638, 8
    %s1640 = scalar_lea.vmem [#allocation3], %s1639
    %v1641 = vld [vmem:[%s1640] sm:$0xff]
    %v1642 = vld [vmem:[%s1640 + $0x8] sm:$0xff]
    %v1643 = vld [vmem:[%s1640 + $0x10] sm:$0xff]
    %1644 = vmatprep.subr.mxu0 %v379
    %1645 = vmatpush1.msra.mxu0 %v378
    %1646 = vmatprep.subr.mxu0 %v382
    %1647 = vmatpush1.msra.mxu0 %v381
    %1648 = vmatprep.subr.mxu0 %v385
    %1649 = vmatpush1.msra.mxu0 %v384
    %1650 = vmatprep.subr.mxu0 %v388
    %1651 = vmatpush1.msra.mxu0 %v387
    %1652 = vmatprep.subr.mxu0 %v391
    %1653 = vmatpush1.msra.mxu0 %v390
    %1654 = vmatprep.subr.mxu0 %v394
    %1655 = vmatpush1.msra.mxu0 %v393
    %1656 = vmatprep.subr.mxu0 %v397
    %1657 = vmatpush1.msra.mxu0 %v396
    %1658 = vmatprep.subr.mxu0 %v400
    %1659 = vmatpush1.msra.mxu0 %v399
    %1660 = vmatprep.subr.mxu0 %v403
    %1661 = vmatpush1.msra.mxu0 %v402
    %1662 = vmatprep.subr.mxu0 %v406
    %1663 = vmatpush1.msra.mxu0 %v405
    %1664 = vmatprep.subr.mxu0 %v409
    %1665 = vmatpush1.msra.mxu0 %v408
    %1666 = vmatprep.subr.mxu0 %v412
    %1667 = vmatpush1.msra.mxu0 %v411
    %1668 = vmatprep.subr.mxu0 %v415
    %1669 = vmatpush1.msra.mxu0 %v414
    %1670 = vmatprep.subr.mxu0 %v418
    %1671 = vmatpush1.msra.mxu0 %v417
    %1672 = vmatprep.subr.mxu0 %v421
    %1673 = vmatpush1.msra.mxu0 %v420
    %1674 = vmatprep.subr.mxu0 %v424
    %1675 = vmatpush1.msra.mxu0 %v423
    %1676 = vmatprep.subr.mxu0 %v427
    %1677 = vmatpush1.msra.mxu0 %v426
    %1678 = vmatprep.subr.mxu0 %v430
    %1679 = vmatpush1.msra.mxu0 %v429
    %1680 = vmatprep.subr.mxu0 %v433
    %1681 = vmatpush1.msra.mxu0 %v432
    %1682 = vmatprep.subr.mxu0 %v436
    %1683 = vmatpush1.msra.mxu0 %v435
    %1684 = vmatprep.subr.mxu0 %v439
    %1685 = vmatpush1.msra.mxu0 %v438
    %1686 = vmatprep.subr.mxu0 %v442
    %1687 = vmatpush1.msra.mxu0 %v441
    %1688 = vmatprep.subr.mxu0 %v445
    %1689 = vmatpush1.msra.mxu0 %v444
    %1690 = vmatprep.subr.mxu0 %v448
    %1691 = vmatpush1.msra.mxu0 %v447
    %1692 = vmatprep.subr.mxu0 %v451
    %1693 = vmatpush1.msra.mxu0 %v450
    %1694 = vmatprep.subr.mxu0 %v454
    %1695 = vmatpush1.msra.mxu0 %v453
    %1696 = vmatprep.subr.mxu0 %v457
    %1697 = vmatpush1.msra.mxu0 %v456
    %1698 = vmatprep.subr.mxu0 %v460
    %1699 = vmatpush1.msra.mxu0 %v459
    %1700 = vmatprep.subr.mxu0 %v463
    %1701 = vmatpush1.msra.mxu0 %v462
    %1702 = vmatprep.subr.mxu0 %v466
    %1703 = vmatpush1.msra.mxu0 %v465
    %1704 = vmatprep.subr.mxu0 %v469
    %1705 = vmatpush1.msra.mxu0 %v468
    %1706 = vmatprep.subr.mxu0 %v472
    %1707 = vmatpush1.msra.mxu0 %v471
    %1708 = vmatprep.mubr.f32.mxu0 %v1637
    %1709 = vmatmul.mubr.f32.gmra.mrb[0].mxu0 %v1634
    %v1710 = vpop.f32.mrb[0].mxu0
    %v1711 = vadd.f32 0.0, %v1710
    %v1712 = vpop.f32.mrb[0].mxu0
    %v1713 = vadd.f32 0.0, %v1712
    %1714 = vdwg.mxu0
    %1715 = vmatprep.subr.mxu0 0.0
    %1716 = vmatpush1.msra.mxu0 %v380
    %1717 = vmatprep.subr.mxu0 0.0
    %1718 = vmatpush1.msra.mxu0 %v383
    %1719 = vmatprep.subr.mxu0 0.0
    %1720 = vmatpush1.msra.mxu0 %v386
    %1721 = vmatprep.subr.mxu0 0.0
    %1722 = vmatpush1.msra.mxu0 %v389
    %1723 = vmatprep.subr.mxu0 0.0
    %1724 = vmatpush1.msra.mxu0 %v392
    %1725 = vmatprep.subr.mxu0 0.0
    %1726 = vmatpush1.msra.mxu0 %v395
    %1727 = vmatprep.subr.mxu0 0.0
    %1728 = vmatpush1.msra.mxu0 %v398
    %1729 = vmatprep.subr.mxu0 0.0
    %1730 = vmatpush1.msra.mxu0 %v401
    %1731 = vmatprep.subr.mxu0 0.0
    %1732 = vmatpush1.msra.mxu0 %v404
    %1733 = vmatprep.subr.mxu0 0.0
    %1734 = vmatpush1.msra.mxu0 %v407
    %1735 = vmatprep.subr.mxu0 0.0
    %1736 = vmatpush1.msra.mxu0 %v410
    %1737 = vmatprep.subr.mxu0 0.0
    %1738 = vmatpush1.msra.mxu0 %v413
    %1739 = vmatprep.subr.mxu0 0.0
    %1740 = vmatpush1.msra.mxu0 %v416
    %1741 = vmatprep.subr.mxu0 0.0
    %1742 = vmatpush1.msra.mxu0 %v419
    %1743 = vmatprep.subr.mxu0 0.0
    %1744 = vmatpush1.msra.mxu0 %v422
    %1745 = vmatprep.subr.mxu0 0.0
    %1746 = vmatpush1.msra.mxu0 %v425
    %1747 = vmatprep.subr.mxu0 0.0
    %1748 = vmatpush1.msra.mxu0 %v428
    %1749 = vmatprep.subr.mxu0 0.0
    %1750 = vmatpush1.msra.mxu0 %v431
    %1751 = vmatprep.subr.mxu0 0.0
    %1752 = vmatpush1.msra.mxu0 %v434
    %1753 = vmatprep.subr.mxu0 0.0
    %1754 = vmatpush1.msra.mxu0 %v437
    %1755 = vmatprep.subr.mxu0 0.0
    %1756 = vmatpush1.msra.mxu0 %v440
    %1757 = vmatprep.subr.mxu0 0.0
    %1758 = vmatpush1.msra.mxu0 %v443
    %1759 = vmatprep.subr.mxu0 0.0
    %1760 = vmatpush1.msra.mxu0 %v446
    %1761 = vmatprep.subr.mxu0 0.0
    %1762 = vmatpush1.msra.mxu0 %v449
    %1763 = vmatprep.subr.mxu0 0.0
    %1764 = vmatpush1.msra.mxu0 %v452
    %1765 = vmatprep.subr.mxu0 0.0
    %1766 = vmatpush1.msra.mxu0 %v455
    %1767 = vmatprep.subr.mxu0 0.0
    %1768 = vmatpush1.msra.mxu0 %v458
    %1769 = vmatprep.subr.mxu0 0.0
    %1770 = vmatpush1.msra.mxu0 %v461
    %1771 = vmatprep.subr.mxu0 0.0
    %1772 = vmatpush1.msra.mxu0 %v464
    %1773 = vmatprep.subr.mxu0 0.0
    %1774 = vmatpush1.msra.mxu0 %v467
    %1775 = vmatprep.subr.mxu0 0.0
    %1776 = vmatpush1.msra.mxu0 %v470
    %1777 = vmatprep.subr.mxu0 0.0
    %1778 = vmatpush1.msra.mxu0 %v473
    %1779 = vmatprep.mubr.f32.mxu0 %v1637
    %1780 = vmatmul.mubr.f32.gmra.mrb[0].mxu0 %v1634
    %v1781 = vpop.f32.mrb[0].mxu0
    %v1782 = vadd.f32 0.0, %v1781
    %v1783 = vpop.f32.mrb[0].mxu0
    %1784 = vdwg.mxu0
    %v1785 = vadd.f32 %v1641, %v1711
    %v1786 = vadd.f32 %v1642, %v1713
    %v1787 = vadd.f32 %v1643, %v1782
    %v1788 = vxor.u32 %v1785, 2147483648
    %v1789 = vxor.u32 %v1786, 2147483648
    %v1790 = vmul.f32 %v1788, 1.442695
    %v1791 = vpow.pop %v1790
    %v1792 = vmul.f32 %v1789, 1.442695
    %v1793 = vpow.pop %v1792
    %v1794 = vadd.f32 %v1791, 1.0
    %v1795 = vadd.f32 %v1793, 1.0
    %v1796 = vrcp.pop %v1794
    %v1797 = vmul.f32 1.0, %v1796
    %v1798 = vrcp.pop %v1795
    %v1799 = vmul.f32 1.0, %v1798
    %v1800 = vtanh.pop %v1787
    %v1801 = vmul.f32 %v1797, %v1637
    %v1802 = vmul.f32 %v1799, %v1800
    %v1803 = vsub.f32 %v1801, %v1802
    %1804 = vst [vmem:[#allocation2] sm:$0xff] %v1800
    %1805 = vst [vmem:[#allocation2 + $0x8] sm:$0xff] %v1803
    // Predicated region
    $region46: #{egsnp_forward.1} parent=1 // pred_check
      %p1806 = pneg %p74
    $region47: #{egsnp_forward.1} parent=1 // pred_check_branch
      %1808 = sbr.rel (%p1806) target = $region49
    $region48: #{egsnp_forward.1} parent=1 // pred_region
      %v1809 = vld [vmem:[#allocation2] sm:$0xff]
      %v1810 = vld [vmem:[%s4] sm:$0xff]
      %v1811 = vld [vmem:[%s4 + $0x8] sm:$0xff]
      %v1812 = vld [vmem:[%s4 + $0x10] sm:$0xff]
      %v1813 = vld [vmem:[%s4 + $0x18] sm:$0xff]
      %v1814 = vld [vmem:[%s4 + $0x20] sm:$0xff]
      %v1815 = vld [vmem:[%s4 + $0x28] sm:$0xff]
      %v1816 = vld [vmem:[%s4 + $0x30] sm:$0xff]
      %v1817 = vld [vmem:[%s4 + $0x38] sm:$0xff]
      %v1818 = vld [vmem:[%s4 + $0x40] sm:$0xff]
      %v1819 = vld [vmem:[%s4 + $0x48] sm:$0xff]
      %v1820 = vld [vmem:[%s4 + $0x50] sm:$0xff]
      %v1821 = vld [vmem:[%s4 + $0x58] sm:$0xff]
      %v1822 = vld [vmem:[%s4 + $0x60] sm:$0xff]
      %v1823 = vld [vmem:[%s4 + $0x68] sm:$0xff]
      %v1824 = vld [vmem:[%s4 + $0x70] sm:$0xff]
      %v1825 = vld [vmem:[%s4 + $0x78] sm:$0xff]
      %v1826 = vld [vmem:[#allocation9] sm:$0x1]
      %v1828 = vlaneseq
      %v1829 = vshrl.u32 %v1828, 7
      %v1830 = vsub.s32 0, %v1829
      %v1831 = vrot.slane %v1826, %v1830
      %1833 = vmatprep.subr.mxu0 0.0
      %1834 = vmatpush1.msra.mxu0 %v1810
      %1835 = vmatprep.subr.mxu0 0.0
      %1836 = vmatpush1.msra.mxu0 %v1811
      %1837 = vmatprep.subr.mxu0 0.0
      %1838 = vmatpush1.msra.mxu0 %v1812
      %1839 = vmatprep.subr.mxu0 0.0
      %1840 = vmatpush1.msra.mxu0 %v1813
      %1841 = vmatprep.subr.mxu0 0.0
      %1842 = vmatpush1.msra.mxu0 %v1814
      %1843 = vmatprep.subr.mxu0 0.0
      %1844 = vmatpush1.msra.mxu0 %v1815
      %1845 = vmatprep.subr.mxu0 0.0
      %1846 = vmatpush1.msra.mxu0 %v1816
      %1847 = vmatprep.subr.mxu0 0.0
      %1848 = vmatpush1.msra.mxu0 %v1817
      %1849 = vmatprep.subr.mxu0 0.0
      %1850 = vmatpush1.msra.mxu0 %v1818
      %1851 = vmatprep.subr.mxu0 0.0
      %1852 = vmatpush1.msra.mxu0 %v1819
      %1853 = vmatprep.subr.mxu0 0.0
      %1854 = vmatpush1.msra.mxu0 %v1820
      %1855 = vmatprep.subr.mxu0 0.0
      %1856 = vmatpush1.msra.mxu0 %v1821
      %1857 = vmatprep.subr.mxu0 0.0
      %1858 = vmatpush1.msra.mxu0 %v1822
      %1859 = vmatprep.subr.mxu0 0.0
      %1860 = vmatpush1.msra.mxu0 %v1823
      %1861 = vmatprep.subr.mxu0 0.0
      %1862 = vmatpush1.msra.mxu0 %v1824
      %1863 = vmatprep.subr.mxu0 0.0
      %1864 = vmatpush1.msra.mxu0 %v1825
      %1865 = vmatprep.subr.mxu0 0.0
      %1866 = vmatpush1.msra.mxu0 0.0
      %1867 = vmatprep.subr.mxu0 0.0
      %1868 = vmatpush1.msra.mxu0 0.0
      %1869 = vmatprep.subr.mxu0 0.0
      %1870 = vmatpush1.msra.mxu0 0.0
      %1871 = vmatprep.subr.mxu0 0.0
      %1872 = vmatpush1.msra.mxu0 0.0
      %1873 = vmatprep.subr.mxu0 0.0
      %1874 = vmatpush1.msra.mxu0 0.0
      %1875 = vmatprep.subr.mxu0 0.0
      %1876 = vmatpush1.msra.mxu0 0.0
      %1877 = vmatprep.subr.mxu0 0.0
      %1878 = vmatpush1.msra.mxu0 0.0
      %1879 = vmatprep.subr.mxu0 0.0
      %1880 = vmatpush1.msra.mxu0 0.0
      %1881 = vmatprep.subr.mxu0 0.0
      %1882 = vmatpush1.msra.mxu0 0.0
      %1883 = vmatprep.subr.mxu0 0.0
      %1884 = vmatpush1.msra.mxu0 0.0
      %1885 = vmatprep.subr.mxu0 0.0
      %1886 = vmatpush1.msra.mxu0 0.0
      %1887 = vmatprep.subr.mxu0 0.0
      %1888 = vmatpush1.msra.mxu0 0.0
      %1889 = vmatprep.subr.mxu0 0.0
      %1890 = vmatpush1.msra.mxu0 0.0
      %1891 = vmatprep.subr.mxu0 0.0
      %1892 = vmatpush1.msra.mxu0 0.0
      %1893 = vmatprep.subr.mxu0 0.0
      %1894 = vmatpush1.msra.mxu0 0.0
      %1895 = vmatprep.subr.mxu0 0.0
      %1896 = vmatpush1.msra.mxu0 0.0
      %1897 = vmatprep.mubr.f32.mxu0 0.0
      %1898 = vmatmul.mubr.f32.gmra.mrb[0].mxu0 %v1809
      %v1899 = vpop.f32.mrb[0].mxu0
      %v1900 = vadd.f32 %v1831, %v1899
      %v1901 = vpop.f32.mrb[0].mxu0
      %1902 = vdwg.mxu0
      %1903 = vst [vmem:[%s6] sm:$0xff] %v1900
    $region49: #{egsnp_forward.1} parent=1 // pred_fallthru
      _
    // Predicated region
    $region50: #{egsnp_forward.1} parent=1 // pred_check
      _
    $region51: #{egsnp_forward.1} parent=1 // pred_check_branch
      %1905 = sbr.rel (0) target = $region53
    $region52: #{egsnp_forward.1} parent=1 // pred_region
      _
    $region53: #{egsnp_forward.1} parent=1 // pred_fallthru
      _
    // Predicated region
    $region54: #{egsnp_forward.1} parent=1 // pred_check
      _
    $region55: #{egsnp_forward.1} parent=1 // pred_check_branch
      %1907 = sbr.rel (0) target = $region57
    $region56: #{egsnp_forward.1} parent=1 // pred_region
      _
    $region57: #{egsnp_forward.1} parent=1 // pred_fallthru
      _
    %1908 = vsyncpa [#allocation5], 1
    %1909 = vsyncpa [#allocation7], 1
    %1910 = vsyncpa [#allocation10], 1

</llo_original>
